<compile_context>
chip_gen: v5e
topology: v5e:2x2
jax: 0.10.0
libtpu: 0.0.40
codegen_flags: <defaults>
</compile_context>

<pallas_src>
import numpy as np
import jax
import jax.numpy as jnp
from jax.experimental import pallas as pl
from jax.experimental.pallas import tpu as pltpu

BN_EPS = 1e-5
LAYER_DIMS = [64, 32, 16, 8]   # layer1_no .. layer4_no from the PyTorch module
SLAB_LANES = 128               # param slab lane width (one (8,128) tile wide)


def _round8(n):
    return ((n + 7) // 8) * 8


def _round_up(n, m):
    return ((n + m - 1) // m) * m


def _cdiv(a, b):
    return (a + b - 1) // b


# ---------------------------------------------------------------------------
# Host-side parameter packing (transposed weights, folded biases, one slab)
# ---------------------------------------------------------------------------
def pack_params(params, in_dim, out_dim):
    """Pack all parameters for the (C, batch) kernel layout into one (rows, 128) f32 slab.

    Weights are stored as (cout, cin) (so the kernel does W @ H), BN affines and biases as
    (c, 1) columns (broadcast across batch lanes).  b1 is folded into the bn2 shift and
    b2 + b_shortcut are pre-summed.  Returns (slab, layout) where layout holds static
    (row_offset, rows, cols) tuples used for zero-cost static slices in the kernel."""
    dims = [in_dim] + LAYER_DIMS
    entries = []   # (row_offset, np.ndarray 2D)
    cursor = 0

    def add(arr):
        nonlocal cursor
        arr = np.asarray(arr, dtype=np.float32)
        r, c = arr.shape
        assert c <= SLAB_LANES, f"param wider than slab: {arr.shape}"
        off = cursor
        cursor += _round8(r)          # keep every item 8-row (sublane-tile) aligned
        entries.append((off, arr))
        return (off, r, c)

    def col(v):                       # (1, c) row vector -> (c, 1) column vector
        return np.asarray(v, dtype=np.float32).reshape(-1, 1)

    idx = 0
    blocks = []
    for i in range(len(LAYER_DIMS)):
        cin, cout = dims[i], dims[i + 1]
        s1, sh1, w1, b1, s2, sh2, w2, b2, ws, bs = [
            np.asarray(p, dtype=np.float32) for p in params[idx:idx + 10]]
        idx += 10

        sh2_folded = sh2 + b1 * s2        # fold linear1 bias into the bn2 shift
        b_fused = b2 + bs                 # shared bias of linear2 + shortcut

        blocks.append(dict(
            cin=cin, cout=cout,
            s1=add(col(s1)), sh1=add(col(sh1)),
            w1=add(w1.T),                 # (cout, cin): un-transposed for W @ H
            s2=add(col(s2)), sh2=add(col(sh2_folded)),
            w2=add(w2.T),                 # (cout, cout)
            ws=add(ws.T),                 # (cout, cin)  shortcut Linear
            bf=add(col(b_fused)),
        ))

    w_final = np.asarray(params[idx], dtype=np.float32)       # stored (cin, cout)
    b_final = np.asarray(params[idx + 1], dtype=np.float32)   # (1, out_dim)
    final = dict(w=add(w_final.T), b=add(col(b_final)))       # (out_dim, 8), (out_dim, 1)

    total_rows = _round8(cursor)
    slab = np.zeros((total_rows, SLAB_LANES), dtype=np.float32)
    for off, arr in entries:
        r, c = arr.shape
        slab[off:off + r, :c] = arr
    return jnp.asarray(slab), dict(blocks=blocks, final=final, out_dim=out_dim)


# ---------------------------------------------------------------------------
# Kernel (built per-layout: all slice offsets are compile-time constants)
# ---------------------------------------------------------------------------
def _make_kernel(layout):
    blocks = layout["blocks"]
    final = layout["final"]

    def _take(p_ref, entry):
        off, r, c = entry
        return p_ref[off:off + r, :c]    # static slice into the VMEM-resident slab

    def kernel(x_ref, p_ref, o_ref):
        # (C, T): channels on sublanes, batch on lanes -> lane-dense VPU work and stores.
        h = x_ref[...].astype(jnp.float32)
        for blk in blocks:
            s1 = _take(p_ref, blk["s1"])      # (cin, 1)
            sh1 = _take(p_ref, blk["sh1"])    # (cin, 1)
            w1 = _take(p_ref, blk["w1"])      # (cout, cin)
            s2 = _take(p_ref, blk["s2"])      # (cout, 1)
            sh2 = _take(p_ref, blk["sh2"])    # (cout, 1) -- b1 already folded in
            w2 = _take(p_ref, blk["w2"])      # (cout, cout)
            ws = _take(p_ref, blk["ws"])      # (cout, cin)
            bf = _take(p_ref, blk["bf"])      # (cout, 1) = b2 + b_shortcut

            z = jnp.maximum(h * s1 + sh1, 0.0)                                # bn1 + relu
            z = jnp.dot(w1, z, preferred_element_type=jnp.float32)            # linear1 (bias folded)
            z = jnp.maximum(z * s2 + sh2, 0.0)                                # bn2 + relu
            h = jnp.maximum(                                                  # linear2 + shortcut + relu
                jnp.dot(w2, z, preferred_element_type=jnp.float32)
                + jnp.dot(ws, h, preferred_element_type=jnp.float32)
                + bf, 0.0)

        w_out = _take(p_ref, final["w"])      # (out_dim, 8)
        b_out = _take(p_ref, final["b"])      # (out_dim, 1)
        out = jnp.dot(w_out, h, preferred_element_type=jnp.float32) + b_out   # final Linear
        o_ref[...] = out.astype(o_ref.dtype)

    return kernel


# ---------------------------------------------------------------------------
# Generation-aware planning
# ---------------------------------------------------------------------------
def _tpu_plan():
    """Return (num_tensorcores_per_chip, vmem_limit_bytes | None)."""
    try:
        kind = jax.devices()[0].device_kind.lower()
    except Exception:
        kind = ""
    if "v7" in kind or "7x" in kind:
        return 2, 32 << 20      # dual-TC; 64 MiB physical VMEM per TC -> conservative 32 MiB scoped
    if "v6" in kind:
        return 1, 64 << 20      # single TC; 128 MiB physical VMEM
    if "v5" in kind:
        # v5e ("lite"): 1 TC.  v5p: 2 TCs (megacore).  Both: 128 MiB physical VMEM.
        num_tc = 1 if ("lite" in kind or "v5e" in kind) else 2
        return num_tc, 64 << 20
    return 1, None              # unknown generation: conservative, keep compiler default limit


def _plan_batch(B, in_dim, out_dim, slab_bytes, num_tc, vmem_limit):
    """Pick (padded_batch, batch_tile): 1 step on single-TC chips, even steps on dual-TC,
    tile capped by the VMEM budget and lane-aligned (multiple of 128)."""
    budget = vmem_limit if vmem_limit is not None else (16 << 20)
    # batch-proportional VMEM: ~6 live (<=64, T) f32 activations + double-buffered I/O tiles
    per_elem = 4 * (6 * 64 + 2 * in_dim + 2 * out_dim)
    # slab is double-buffered by the default pipeline -> charge it twice, plus a fixed margin.
    avail = max(budget - 2 * slab_bytes - (2 << 20), 1 << 20)
    cap = max(128, (avail // per_elem) // 128 * 128)

    Bp = _round_up(B, 128)                       # lane-aligned batch (zero-padded in wrapper)
    steps = max(1, _cdiv(Bp, cap))               # single step on v5e/v6e whenever it fits VMEM
    if num_tc >= 2 and Bp >= 256:
        steps = max(2, _round_up(steps, 2))      # even step count -> both TensorCores balanced
    tile = _round_up(_cdiv(Bp, steps), 128)
    return tile * steps, tile


# ---------------------------------------------------------------------------
# Wrapper
# ---------------------------------------------------------------------------
def small_residual_network(x, slab, layout, *, batch_tile=None):
    B, in_dim = x.shape
    out_dim = layout["out_dim"]
    num_tc, vmem_limit = _tpu_plan()
    slab_bytes = slab.size * slab.dtype.itemsize

    if batch_tile is None:
        Bp, tile = _plan_batch(B, in_dim, out_dim, slab_bytes, num_tc, vmem_limit)
    else:
        tile = int(batch_tile)
        Bp = _round_up(B, tile)
        assert tile % 128 == 0 or tile == Bp, \
            "batch_tile must be a multiple of 128 (lane axis) or cover the whole padded batch"

    # Layout plumbing (outside the kernel): (B, C) -> lane-dense (C, B), zero-pad batch to Bp.
    xt = jnp.swapaxes(x, 0, 1)
    if Bp != B:
        xt = jnp.zeros((in_dim, Bp), x.dtype).at[:, :B].set(xt)

    kernel = _make_kernel(layout)
    cp_kwargs = dict(dimension_semantics=("parallel",))
    if vmem_limit is not None:
        cp_kwargs["vmem_limit_bytes"] = vmem_limit

    out_t = pl.pallas_call(
        kernel,
        out_shape=jax.ShapeDtypeStruct((out_dim, Bp), x.dtype),
        grid=(Bp // tile,),
        in_specs=[
            pl.BlockSpec((in_dim, tile), lambda i: (0, i)),
            # Single packed parameter slab: same block every step -> DMA'd once, VMEM-resident.
            # (Its default double-buffer is already charged in _plan_batch's VMEM budget.)
            pl.BlockSpec(slab.shape, lambda i: (0, 0)),
        ],
        out_specs=pl.BlockSpec((out_dim, tile), lambda i: (0, i)),
        compiler_params=pltpu.CompilerParams(**cp_kwargs),
    )(xt, slab)

    return jnp.swapaxes(out_t[:, :B], 0, 1)      # back to (B, out_dim)


# ---------------------------------------------------------------------------
# Deterministic parameter init (synthetic -- mirrors the module's __init__ shapes)
# ---------------------------------------------------------------------------
def init_params(key, in_dim, out_dim):
    dims = [in_dim] + LAYER_DIMS
    keys = iter(jax.random.split(key, 128))
    nxt = lambda: next(keys)
    params = []

    def bn_fold(c):
        gamma = jax.random.uniform(nxt(), (c,), minval=0.5, maxval=1.5)
        beta = 0.1 * jax.random.normal(nxt(), (c,))
        rmean = 0.1 * jax.random.normal(nxt(), (c,))
        rvar = jax.random.uniform(nxt(), (c,), minval=0.5, maxval=1.5)
        scale = gamma / jnp.sqrt(rvar + BN_EPS)
        shift = beta - rmean * scale
        return scale.reshape(1, c).astype(jnp.float32), shift.reshape(1, c).astype(jnp.float32)

    def linear(cin, cout):
        w = (jax.random.normal(nxt(), (cin, cout)) / jnp.sqrt(cin)).astype(jnp.float32)
        b = (0.1 * jax.random.normal(nxt(), (1, cout))).astype(jnp.float32)
        return w, b

    for i in range(len(LAYER_DIMS)):
        cin, cout = dims[i], dims[i + 1]
        s1, sh1 = bn_fold(cin)
        w1, b1 = linear(cin, cout)
        s2, sh2 = bn_fold(cout)
        w2, b2 = linear(cout, cout)
        ws, bs = linear(cin, cout)        # shortcut Linear
        params += [s1, sh1, w1, b1, s2, sh2, w2, b2, ws, bs]

    wf, bf = linear(LAYER_DIMS[-1], out_dim)  # final nn.Linear(8, out_dim)
    params += [wf, bf]
    return params


# Pure-JAX reference (unfolded / unfused math, (B, C) layout) for a correctness check.
def reference_forward(x, params):
    h = x.astype(jnp.float32)
    idx = 0
    for _ in range(len(LAYER_DIMS)):
        s1, sh1, w1, b1, s2, sh2, w2, b2, ws, bs = params[idx:idx + 10]
        idx += 10
        z = jnp.maximum(h * s1 + sh1, 0.0)
        z = z @ w1 + b1
        z = jnp.maximum(z * s2 + sh2, 0.0)
        z = z @ w2 + b2
        h = jnp.maximum(z + (h @ ws + bs), 0.0)
    return h @ params[idx] + params[idx + 1]


if __name__ == "__main__":
    key = jax.random.PRNGKey(0)
    kx, kp = jax.random.split(key)

    B, IN_DIM, OUT_DIM = 256, 16, 4
    x = jax.random.normal(kx, (B, IN_DIM), dtype=jnp.float32)
    params = init_params(kp, IN_DIM, OUT_DIM)
    slab, layout = pack_params(params, IN_DIM, OUT_DIM)

    out = jax.block_until_ready(small_residual_network(x, slab, layout))

    ref = reference_forward(x, params)
    assert out.shape == (B, OUT_DIM), out.shape
    max_err = float(jnp.max(jnp.abs(out - ref)))
    assert jnp.allclose(out, ref, atol=2e-4, rtol=2e-4), max_err

    print("KERNEL_OK")
</pallas_src>

<mosaic_0001>
module attributes {stable_mosaic.version = 11 : i64} {
  func.func @kernel(%arg0: i32, %arg1: memref<16x256xf32, #tpu.memory_space<vmem>>, %arg2: memref<992x128xf32, #tpu.memory_space<vmem>>, %arg3: memref<4x256xf32, #tpu.memory_space<vmem>>) attributes {dimension_semantics = [#tpu.dimension_semantics<parallel>], iteration_bounds = array<i64: 1>, scalar_prefetch = 0 : i64, scratch_operands = 0 : i64, tpu.core_type = #tpu.core_type<tc>, window_params = [{transform_indices = @transform_0, window_bounds = array<i64: 16, 256>}, {pipeline_mode = #tpu.pipeline_mode<synchronous>, transform_indices = @transform_1, window_bounds = array<i64: 992, 128>}, {transform_indices = @transform_2, window_bounds = array<i64: 4, 256>}]} {
    %c0 = arith.constant 0 : index
    %c0_0 = arith.constant 0 : index
    %0 = vector.load %arg1[%c0, %c0_0] : memref<16x256xf32, #tpu.memory_space<vmem>>, vector<16x256xf32>
    %c0_1 = arith.constant 0 : index
    %c0_2 = arith.constant 0 : index
    %1 = vector.load %arg2[%c0_1, %c0_2] : memref<992x128xf32, #tpu.memory_space<vmem>>, vector<16x1xf32>
    %c16 = arith.constant 16 : index
    %c0_3 = arith.constant 0 : index
    %2 = vector.load %arg2[%c16, %c0_3] : memref<992x128xf32, #tpu.memory_space<vmem>>, vector<16x1xf32>
    %c32 = arith.constant 32 : index
    %c0_4 = arith.constant 0 : index
    %3 = vector.load %arg2[%c32, %c0_4] : memref<992x128xf32, #tpu.memory_space<vmem>>, vector<64x16xf32>
    %c96 = arith.constant 96 : index
    %c0_5 = arith.constant 0 : index
    %4 = vector.load %arg2[%c96, %c0_5] : memref<992x128xf32, #tpu.memory_space<vmem>>, vector<64x1xf32>
    %c160 = arith.constant 160 : index
    %c0_6 = arith.constant 0 : index
    %5 = vector.load %arg2[%c160, %c0_6] : memref<992x128xf32, #tpu.memory_space<vmem>>, vector<64x1xf32>
    %c224 = arith.constant 224 : index
    %c0_7 = arith.constant 0 : index
    %6 = vector.load %arg2[%c224, %c0_7] : memref<992x128xf32, #tpu.memory_space<vmem>>, vector<64x64xf32>
    %c288 = arith.constant 288 : index
    %c0_8 = arith.constant 0 : index
    %7 = vector.load %arg2[%c288, %c0_8] : memref<992x128xf32, #tpu.memory_space<vmem>>, vector<64x16xf32>
    %c352 = arith.constant 352 : index
    %c0_9 = arith.constant 0 : index
    %8 = vector.load %arg2[%c352, %c0_9] : memref<992x128xf32, #tpu.memory_space<vmem>>, vector<64x1xf32>
    %9 = vector.broadcast %1 : vector<16x1xf32> to vector<16x256xf32>
    %10 = arith.mulf %0, %9 : vector<16x256xf32>
    %11 = vector.broadcast %2 : vector<16x1xf32> to vector<16x256xf32>
    %12 = arith.addf %10, %11 : vector<16x256xf32>
    %cst = arith.constant 0.000000e+00 : f32
    %13 = vector.broadcast %cst : f32 to vector<16x256xf32>
    %14 = arith.maximumf %12, %13 : vector<16x256xf32>
    %cst_10 = arith.constant dense<0.000000e+00> : vector<64x256xf32>
    %15 = tpu.matmul %3, %14, %cst_10 {dimension_numbers = #tpu.dot_dimension_numbers<[1], [0], [0], [1], [0, 0, 1, 1], [], []>} : vector<64x16xf32>, vector<16x256xf32>, vector<64x256xf32> -> vector<64x256xf32>
    %16 = vector.broadcast %4 : vector<64x1xf32> to vector<64x256xf32>
    %17 = arith.mulf %15, %16 : vector<64x256xf32>
    %18 = vector.broadcast %5 : vector<64x1xf32> to vector<64x256xf32>
    %19 = arith.addf %17, %18 : vector<64x256xf32>
    %cst_11 = arith.constant 0.000000e+00 : f32
    %20 = vector.broadcast %cst_11 : f32 to vector<64x256xf32>
    %21 = arith.maximumf %19, %20 : vector<64x256xf32>
    %cst_12 = arith.constant dense<0.000000e+00> : vector<64x256xf32>
    %22 = tpu.matmul %6, %21, %cst_12 {dimension_numbers = #tpu.dot_dimension_numbers<[1], [0], [0], [1], [0, 0, 1, 1], [], []>} : vector<64x64xf32>, vector<64x256xf32>, vector<64x256xf32> -> vector<64x256xf32>
    %cst_13 = arith.constant dense<0.000000e+00> : vector<64x256xf32>
    %23 = tpu.matmul %7, %0, %cst_13 {dimension_numbers = #tpu.dot_dimension_numbers<[1], [0], [0], [1], [0, 0, 1, 1], [], []>} : vector<64x16xf32>, vector<16x256xf32>, vector<64x256xf32> -> vector<64x256xf32>
    %24 = arith.addf %22, %23 : vector<64x256xf32>
    %25 = vector.broadcast %8 : vector<64x1xf32> to vector<64x256xf32>
    %26 = arith.addf %24, %25 : vector<64x256xf32>
    %cst_14 = arith.constant 0.000000e+00 : f32
    %27 = vector.broadcast %cst_14 : f32 to vector<64x256xf32>
    %28 = arith.maximumf %26, %27 : vector<64x256xf32>
    %c416 = arith.constant 416 : index
    %c0_15 = arith.constant 0 : index
    %29 = vector.load %arg2[%c416, %c0_15] : memref<992x128xf32, #tpu.memory_space<vmem>>, vector<64x1xf32>
    %c480 = arith.constant 480 : index
    %c0_16 = arith.constant 0 : index
    %30 = vector.load %arg2[%c480, %c0_16] : memref<992x128xf32, #tpu.memory_space<vmem>>, vector<64x1xf32>
    %c544 = arith.constant 544 : index
    %c0_17 = arith.constant 0 : index
    %31 = vector.load %arg2[%c544, %c0_17] : memref<992x128xf32, #tpu.memory_space<vmem>>, vector<32x64xf32>
    %c576 = arith.constant 576 : index
    %c0_18 = arith.constant 0 : index
    %32 = vector.load %arg2[%c576, %c0_18] : memref<992x128xf32, #tpu.memory_space<vmem>>, vector<32x1xf32>
    %c608 = arith.constant 608 : index
    %c0_19 = arith.constant 0 : index
    %33 = vector.load %arg2[%c608, %c0_19] : memref<992x128xf32, #tpu.memory_space<vmem>>, vector<32x1xf32>
    %c640 = arith.constant 640 : index
    %c0_20 = arith.constant 0 : index
    %34 = vector.load %arg2[%c640, %c0_20] : memref<992x128xf32, #tpu.memory_space<vmem>>, vector<32x32xf32>
    %c672 = arith.constant 672 : index
    %c0_21 = arith.constant 0 : index
    %35 = vector.load %arg2[%c672, %c0_21] : memref<992x128xf32, #tpu.memory_space<vmem>>, vector<32x64xf32>
    %c704 = arith.constant 704 : index
    %c0_22 = arith.constant 0 : index
    %36 = vector.load %arg2[%c704, %c0_22] : memref<992x128xf32, #tpu.memory_space<vmem>>, vector<32x1xf32>
    %37 = vector.broadcast %29 : vector<64x1xf32> to vector<64x256xf32>
    %38 = arith.mulf %28, %37 : vector<64x256xf32>
    %39 = vector.broadcast %30 : vector<64x1xf32> to vector<64x256xf32>
    %40 = arith.addf %38, %39 : vector<64x256xf32>
    %cst_23 = arith.constant 0.000000e+00 : f32
    %41 = vector.broadcast %cst_23 : f32 to vector<64x256xf32>
    %42 = arith.maximumf %40, %41 : vector<64x256xf32>
    %cst_24 = arith.constant dense<0.000000e+00> : vector<32x256xf32>
    %43 = tpu.matmul %31, %42, %cst_24 {dimension_numbers = #tpu.dot_dimension_numbers<[1], [0], [0], [1], [0, 0, 1, 1], [], []>} : vector<32x64xf32>, vector<64x256xf32>, vector<32x256xf32> -> vector<32x256xf32>
    %44 = vector.broadcast %32 : vector<32x1xf32> to vector<32x256xf32>
    %45 = arith.mulf %43, %44 : vector<32x256xf32>
    %46 = vector.broadcast %33 : vector<32x1xf32> to vector<32x256xf32>
    %47 = arith.addf %45, %46 : vector<32x256xf32>
    %cst_25 = arith.constant 0.000000e+00 : f32
    %48 = vector.broadcast %cst_25 : f32 to vector<32x256xf32>
    %49 = arith.maximumf %47, %48 : vector<32x256xf32>
    %cst_26 = arith.constant dense<0.000000e+00> : vector<32x256xf32>
    %50 = tpu.matmul %34, %49, %cst_26 {dimension_numbers = #tpu.dot_dimension_numbers<[1], [0], [0], [1], [0, 0, 1, 1], [], []>} : vector<32x32xf32>, vector<32x256xf32>, vector<32x256xf32> -> vector<32x256xf32>
    %cst_27 = arith.constant dense<0.000000e+00> : vector<32x256xf32>
    %51 = tpu.matmul %35, %28, %cst_27 {dimension_numbers = #tpu.dot_dimension_numbers<[1], [0], [0], [1], [0, 0, 1, 1], [], []>} : vector<32x64xf32>, vector<64x256xf32>, vector<32x256xf32> -> vector<32x256xf32>
    %52 = arith.addf %50, %51 : vector<32x256xf32>
    %53 = vector.broadcast %36 : vector<32x1xf32> to vector<32x256xf32>
    %54 = arith.addf %52, %53 : vector<32x256xf32>
    %cst_28 = arith.constant 0.000000e+00 : f32
    %55 = vector.broadcast %cst_28 : f32 to vector<32x256xf32>
    %56 = arith.maximumf %54, %55 : vector<32x256xf32>
    %c736 = arith.constant 736 : index
    %c0_29 = arith.constant 0 : index
    %57 = vector.load %arg2[%c736, %c0_29] : memref<992x128xf32, #tpu.memory_space<vmem>>, vector<32x1xf32>
    %c768 = arith.constant 768 : index
    %c0_30 = arith.constant 0 : index
    %58 = vector.load %arg2[%c768, %c0_30] : memref<992x128xf32, #tpu.memory_space<vmem>>, vector<32x1xf32>
    %c800 = arith.constant 800 : index
    %c0_31 = arith.constant 0 : index
    %59 = vector.load %arg2[%c800, %c0_31] : memref<992x128xf32, #tpu.memory_space<vmem>>, vector<16x32xf32>
    %c816 = arith.constant 816 : index
    %c0_32 = arith.constant 0 : index
    %60 = vector.load %arg2[%c816, %c0_32] : memref<992x128xf32, #tpu.memory_space<vmem>>, vector<16x1xf32>
    %c832 = arith.constant 832 : index
    %c0_33 = arith.constant 0 : index
    %61 = vector.load %arg2[%c832, %c0_33] : memref<992x128xf32, #tpu.memory_space<vmem>>, vector<16x1xf32>
    %c848 = arith.constant 848 : index
    %c0_34 = arith.constant 0 : index
    %62 = vector.load %arg2[%c848, %c0_34] : memref<992x128xf32, #tpu.memory_space<vmem>>, vector<16x16xf32>
    %c864 = arith.constant 864 : index
    %c0_35 = arith.constant 0 : index
    %63 = vector.load %arg2[%c864, %c0_35] : memref<992x128xf32, #tpu.memory_space<vmem>>, vector<16x32xf32>
    %c880 = arith.constant 880 : index
    %c0_36 = arith.constant 0 : index
    %64 = vector.load %arg2[%c880, %c0_36] : memref<992x128xf32, #tpu.memory_space<vmem>>, vector<16x1xf32>
    %65 = vector.broadcast %57 : vector<32x1xf32> to vector<32x256xf32>
    %66 = arith.mulf %56, %65 : vector<32x256xf32>
    %67 = vector.broadcast %58 : vector<32x1xf32> to vector<32x256xf32>
    %68 = arith.addf %66, %67 : vector<32x256xf32>
    %cst_37 = arith.constant 0.000000e+00 : f32
    %69 = vector.broadcast %cst_37 : f32 to vector<32x256xf32>
    %70 = arith.maximumf %68, %69 : vector<32x256xf32>
    %cst_38 = arith.constant dense<0.000000e+00> : vector<16x256xf32>
    %71 = tpu.matmul %59, %70, %cst_38 {dimension_numbers = #tpu.dot_dimension_numbers<[1], [0], [0], [1], [0, 0, 1, 1], [], []>} : vector<16x32xf32>, vector<32x256xf32>, vector<16x256xf32> -> vector<16x256xf32>
    %72 = vector.broadcast %60 : vector<16x1xf32> to vector<16x256xf32>
    %73 = arith.mulf %71, %72 : vector<16x256xf32>
    %74 = vector.broadcast %61 : vector<16x1xf32> to vector<16x256xf32>
    %75 = arith.addf %73, %74 : vector<16x256xf32>
    %cst_39 = arith.constant 0.000000e+00 : f32
    %76 = vector.broadcast %cst_39 : f32 to vector<16x256xf32>
    %77 = arith.maximumf %75, %76 : vector<16x256xf32>
    %cst_40 = arith.constant dense<0.000000e+00> : vector<16x256xf32>
    %78 = tpu.matmul %62, %77, %cst_40 {dimension_numbers = #tpu.dot_dimension_numbers<[1], [0], [0], [1], [0, 0, 1, 1], [], []>} : vector<16x16xf32>, vector<16x256xf32>, vector<16x256xf32> -> vector<16x256xf32>
    %cst_41 = arith.constant dense<0.000000e+00> : vector<16x256xf32>
    %79 = tpu.matmul %63, %56, %cst_41 {dimension_numbers = #tpu.dot_dimension_numbers<[1], [0], [0], [1], [0, 0, 1, 1], [], []>} : vector<16x32xf32>, vector<32x256xf32>, vector<16x256xf32> -> vector<16x256xf32>
    %80 = arith.addf %78, %79 : vector<16x256xf32>
    %81 = vector.broadcast %64 : vector<16x1xf32> to vector<16x256xf32>
    %82 = arith.addf %80, %81 : vector<16x256xf32>
    %cst_42 = arith.constant 0.000000e+00 : f32
    %83 = vector.broadcast %cst_42 : f32 to vector<16x256xf32>
    %84 = arith.maximumf %82, %83 : vector<16x256xf32>
    %c896 = arith.constant 896 : index
    %c0_43 = arith.constant 0 : index
    %85 = vector.load %arg2[%c896, %c0_43] : memref<992x128xf32, #tpu.memory_space<vmem>>, vector<16x1xf32>
    %c912 = arith.constant 912 : index
    %c0_44 = arith.constant 0 : index
    %86 = vector.load %arg2[%c912, %c0_44] : memref<992x128xf32, #tpu.memory_space<vmem>>, vector<16x1xf32>
    %c928 = arith.constant 928 : index
    %c0_45 = arith.constant 0 : index
    %87 = vector.load %arg2[%c928, %c0_45] : memref<992x128xf32, #tpu.memory_space<vmem>>, vector<8x16xf32>
    %c936 = arith.constant 936 : index
    %c0_46 = arith.constant 0 : index
    %88 = vector.load %arg2[%c936, %c0_46] : memref<992x128xf32, #tpu.memory_space<vmem>>, vector<8x1xf32>
    %c944 = arith.constant 944 : index
    %c0_47 = arith.constant 0 : index
    %89 = vector.load %arg2[%c944, %c0_47] : memref<992x128xf32, #tpu.memory_space<vmem>>, vector<8x1xf32>
    %c952 = arith.constant 952 : index
    %c0_48 = arith.constant 0 : index
    %90 = vector.load %arg2[%c952, %c0_48] : memref<992x128xf32, #tpu.memory_space<vmem>>, vector<8x8xf32>
    %c960 = arith.constant 960 : index
    %c0_49 = arith.constant 0 : index
    %91 = vector.load %arg2[%c960, %c0_49] : memref<992x128xf32, #tpu.memory_space<vmem>>, vector<8x16xf32>
    %c968 = arith.constant 968 : index
    %c0_50 = arith.constant 0 : index
    %92 = vector.load %arg2[%c968, %c0_50] : memref<992x128xf32, #tpu.memory_space<vmem>>, vector<8x1xf32>
    %93 = vector.broadcast %85 : vector<16x1xf32> to vector<16x256xf32>
    %94 = arith.mulf %84, %93 : vector<16x256xf32>
    %95 = vector.broadcast %86 : vector<16x1xf32> to vector<16x256xf32>
    %96 = arith.addf %94, %95 : vector<16x256xf32>
    %cst_51 = arith.constant 0.000000e+00 : f32
    %97 = vector.broadcast %cst_51 : f32 to vector<16x256xf32>
    %98 = arith.maximumf %96, %97 : vector<16x256xf32>
    %cst_52 = arith.constant dense<0.000000e+00> : vector<8x256xf32>
    %99 = tpu.matmul %87, %98, %cst_52 {dimension_numbers = #tpu.dot_dimension_numbers<[1], [0], [0], [1], [0, 0, 1, 1], [], []>} : vector<8x16xf32>, vector<16x256xf32>, vector<8x256xf32> -> vector<8x256xf32>
    %100 = vector.broadcast %88 : vector<8x1xf32> to vector<8x256xf32>
    %101 = arith.mulf %99, %100 : vector<8x256xf32>
    %102 = vector.broadcast %89 : vector<8x1xf32> to vector<8x256xf32>
    %103 = arith.addf %101, %102 : vector<8x256xf32>
    %cst_53 = arith.constant 0.000000e+00 : f32
    %104 = vector.broadcast %cst_53 : f32 to vector<8x256xf32>
    %105 = arith.maximumf %103, %104 : vector<8x256xf32>
    %cst_54 = arith.constant dense<0.000000e+00> : vector<8x256xf32>
    %106 = tpu.matmul %90, %105, %cst_54 {dimension_numbers = #tpu.dot_dimension_numbers<[1], [0], [0], [1], [0, 0, 1, 1], [], []>} : vector<8x8xf32>, vector<8x256xf32>, vector<8x256xf32> -> vector<8x256xf32>
    %cst_55 = arith.constant dense<0.000000e+00> : vector<8x256xf32>
    %107 = tpu.matmul %91, %84, %cst_55 {dimension_numbers = #tpu.dot_dimension_numbers<[1], [0], [0], [1], [0, 0, 1, 1], [], []>} : vector<8x16xf32>, vector<16x256xf32>, vector<8x256xf32> -> vector<8x256xf32>
    %108 = arith.addf %106, %107 : vector<8x256xf32>
    %109 = vector.broadcast %92 : vector<8x1xf32> to vector<8x256xf32>
    %110 = arith.addf %108, %109 : vector<8x256xf32>
    %cst_56 = arith.constant 0.000000e+00 : f32
    %111 = vector.broadcast %cst_56 : f32 to vector<8x256xf32>
    %112 = arith.maximumf %110, %111 : vector<8x256xf32>
    %c976 = arith.constant 976 : index
    %c0_57 = arith.constant 0 : index
    %113 = vector.load %arg2[%c976, %c0_57] : memref<992x128xf32, #tpu.memory_space<vmem>>, vector<4x8xf32>
    %c984 = arith.constant 984 : index
    %c0_58 = arith.constant 0 : index
    %114 = vector.load %arg2[%c984, %c0_58] : memref<992x128xf32, #tpu.memory_space<vmem>>, vector<4x1xf32>
    %cst_59 = arith.constant dense<0.000000e+00> : vector<4x256xf32>
    %115 = tpu.matmul %113, %112, %cst_59 {dimension_numbers = #tpu.dot_dimension_numbers<[1], [0], [0], [1], [0, 0, 1, 1], [], []>} : vector<4x8xf32>, vector<8x256xf32>, vector<4x256xf32> -> vector<4x256xf32>
    %116 = vector.broadcast %114 : vector<4x1xf32> to vector<4x256xf32>
    %117 = arith.addf %115, %116 : vector<4x256xf32>
    %c0_60 = arith.constant 0 : index
    %c0_61 = arith.constant 0 : index
    %118 = vector.load %arg3[%c0_60, %c0_61] : memref<4x256xf32, #tpu.memory_space<vmem>>, vector<4x256xf32>
    tpu.vector_store %arg3[%c0_60, %c0_61], %117 {strides = array<i32>} : memref<4x256xf32, #tpu.memory_space<vmem>>, vector<4x256xf32>,
    return
  }
  func.func @transform_0(%arg0: i32) -> (i32, i32) {
    %c0_i32 = arith.constant 0 : i32
    %c0_i32_0 = arith.constant 0 : i32
    return %c0_i32, %arg0 : i32, i32
  }
  func.func @transform_1(%arg0: i32) -> (i32, i32) {
    %c0_i32 = arith.constant 0 : i32
    %c0_i32_0 = arith.constant 0 : i32
    %c0_i32_1 = arith.constant 0 : i32
    return %c0_i32, %c0_i32_0 : i32, i32
  }
  func.func @transform_2(%arg0: i32) -> (i32, i32) {
    %c0_i32 = arith.constant 0 : i32
    %c0_i32_0 = arith.constant 0 : i32
    return %c0_i32, %arg0 : i32, i32
  }
}

</mosaic_0001>

<llo_original>
// kernel: tpu_custom_call.1
$region0: #{tpu_custom_call.1}
  #allocation0 [shape = 'u32[]', space=smem, size = 0x4, offset = 0x4, fixed_abs, tag = 'smem constant byte address 0x4 - core index']
  #allocation1 [shape = 'u32[72,128]{1,0:T(1,128)}', space=vmem, size = 0x9000, scoped, tag = 'internal scratch']
  %s0 = inlined_call_operand.hbm [shape: f32[16,256], index: 0, kind: input, shape index: {}]
  %s1 = inlined_call_operand.hbm [shape: f32[992,128], index: 1, kind: input, shape index: {}]
  %s2 = inlined_call_operand.hbm [shape: f32[4,256], index: 2, kind: output, shape index: {}]
  %s3 = sld [smem:[#allocation0]]
  $region26: #{tpu_custom_call.1} parent=0
    _
  %s5 = ssub.s32 1, %s3
  %s6 = scalar_select 0, %s5, %s3
  $region1: #{tpu_custom_call.1} parent=0
    #allocation2 [shape = 'u8[16384]{0}', space=vmem, size = 0x4000, scoped, tag = 'input window, operand 0, single buffered']
    #allocation3 [shape = 's32[1]{0}', space=sflag, size = 0x4, scoped, tag = 'scoped memory for tpu_custom_call.1']
    #allocation4 [shape = 's32[1]{0}', space=sflag, size = 0x4, scoped, tag = 'scoped memory for tpu_custom_call.1']
    #allocation5 [shape = 'u8[507904]{0}', space=vmem, size = 0x7c000, scoped, tag = 'input window, operand 1, single buffered']
    #allocation6 [shape = 's32[1]{0}', space=sflag, size = 0x4, scoped, tag = 'scoped memory for tpu_custom_call.1']
    #allocation7 [shape = 'u8[4096]{0}', space=vmem, size = 0x1000, scoped, tag = 'output window, operand 0, single buffered']
    %7 = vsyncpa [#allocation3], 0
    %8 = vsyncpa [#allocation6], 0
    %9 = vsyncpa [#allocation4], 0
    // Predicated region
    $region2: #{tpu_custom_call.1} parent=1 // pred_check
      _
    $region3: #{tpu_custom_call.1} parent=1 // pred_check_branch
      %11 = sbr.rel (0) target = $region5
    $region4: #{tpu_custom_call.1} parent=1 // pred_region
      %13 = vsyncadd [#allocation3], 0
      %s14 = sshll.u32 %s0, 4
      %s15 = int_to_ptr.hbm [resolvable:$true] %s14
      %s16 = sshll.u32 [#allocation2], 4
      %s17 = int_to_ptr.vmem [resolvable:$true] %s16
      %22 = dma.hbm_to_vmem [thread:$0]  %s15, 512, %s17, [#allocation3], 256, 256, 16
    $region5: #{tpu_custom_call.1} parent=1 // pred_fallthru
      _
    // Predicated region
    $region6: #{tpu_custom_call.1} parent=1 // pred_check
      _
    $region7: #{tpu_custom_call.1} parent=1 // pred_check_branch
      %24 = sbr.rel (0) target = $region9
    $region8: #{tpu_custom_call.1} parent=1 // pred_region
      %26 = vsyncadd [#allocation6], 0
      %s27 = sshll.u32 %s1, 4
      %s28 = int_to_ptr.hbm [resolvable:$true] %s27
      %s29 = sshll.u32 [#allocation5], 4
      %s30 = int_to_ptr.vmem [resolvable:$true] %s29
      %35 = dma.hbm_to_vmem [thread:$0]  %s28, 15872, %s30, [#allocation6], 128, 128, 8
    $region9: #{tpu_custom_call.1} parent=1 // pred_fallthru
      _
    // Predicated region
    $region10: #{tpu_custom_call.1} parent=1 // pred_check
      _
    $region11: #{tpu_custom_call.1} parent=1 // pred_check_branch
      %37 = sbr.rel (0) target = $region13
    $region12: #{tpu_custom_call.1} parent=1 // pred_region
      %39 = dma.done [#allocation3], 512
    $region13: #{tpu_custom_call.1} parent=1 // pred_fallthru
      _
    // Predicated region
    $region14: #{tpu_custom_call.1} parent=1 // pred_check
      _
    $region15: #{tpu_custom_call.1} parent=1 // pred_check_branch
      %41 = sbr.rel (0) target = $region17
    $region16: #{tpu_custom_call.1} parent=1 // pred_region
      %43 = dma.done [#allocation6], 15872
    $region17: #{tpu_custom_call.1} parent=1 // pred_fallthru
      _
    %v44 = vld [vmem:[#allocation2] sm:$0xff]
    %v45 = vld [vmem:[#allocation2 + $0x8] sm:$0xff]
    %v46 = vld [vmem:[#allocation2 + $0x10] sm:$0xff]
    %v47 = vld [vmem:[#allocation2 + $0x18] sm:$0xff]
    %v48 = vld [vmem:[#allocation5] sm:$0xff]
    %v49 = vld [vmem:[#allocation5 + $0x8] sm:$0xff]
    %v50 = vld [vmem:[#allocation5 + $0x10] sm:$0xff]
    %v51 = vld [vmem:[#allocation5 + $0x18] sm:$0xff]
    %v52 = vld [vmem:[#allocation5 + $0x20] sm:$0xff]
    %v53 = vld [vmem:[#allocation5 + $0x28] sm:$0xff]
    %v54 = vld [vmem:[#allocation5 + $0x30] sm:$0xff]
    %v55 = vld [vmem:[#allocation5 + $0x38] sm:$0xff]
    %v56 = vld [vmem:[#allocation5 + $0x40] sm:$0xff]
    %v57 = vld [vmem:[#allocation5 + $0x48] sm:$0xff]
    %v58 = vld [vmem:[#allocation5 + $0x50] sm:$0xff]
    %v59 = vld [vmem:[#allocation5 + $0x58] sm:$0xff]
    %v60 = vld [vmem:[#allocation5 + $0x60] sm:$0xff]
    %v61 = vld [vmem:[#allocation5 + $0x68] sm:$0xff]
    %v62 = vld [vmem:[#allocation5 + $0x70] sm:$0xff]
    %v63 = vld [vmem:[#allocation5 + $0x78] sm:$0xff]
    %v64 = vld [vmem:[#allocation5 + $0x80] sm:$0xff]
    %v65 = vld [vmem:[#allocation5 + $0x88] sm:$0xff]
    %v66 = vld [vmem:[#allocation5 + $0x90] sm:$0xff]
    %v67 = vld [vmem:[#allocation5 + $0x98] sm:$0xff]
    %v68 = vld [vmem:[#allocation5 + $0xa0] sm:$0xff]
    %v69 = vld [vmem:[#allocation5 + $0xa8] sm:$0xff]
    %v70 = vld [vmem:[#allocation5 + $0xb0] sm:$0xff]
    %v71 = vld [vmem:[#allocation5 + $0xb8] sm:$0xff]
    %v72 = vld [vmem:[#allocation5 + $0xc0] sm:$0xff]
    %v73 = vld [vmem:[#allocation5 + $0xc8] sm:$0xff]
    %v74 = vld [vmem:[#allocation5 + $0xd0] sm:$0xff]
    %v75 = vld [vmem:[#allocation5 + $0xd8] sm:$0xff]
    %v76 = vld [vmem:[#allocation5 + $0xe0] sm:$0xff]
    %v77 = vld [vmem:[#allocation5 + $0xe8] sm:$0xff]
    %v78 = vld [vmem:[#allocation5 + $0xf0] sm:$0xff]
    %v79 = vld [vmem:[#allocation5 + $0xf8] sm:$0xff]
    %v80 = vld [vmem:[#allocation5 + $0x100] sm:$0xff]
    %v81 = vld [vmem:[#allocation5 + $0x108] sm:$0xff]
    %v82 = vld [vmem:[#allocation5 + $0x110] sm:$0xff]
    %v83 = vld [vmem:[#allocation5 + $0x118] sm:$0xff]
    %v84 = vld [vmem:[#allocation5 + $0x120] sm:$0xff]
    %v85 = vld [vmem:[#allocation5 + $0x128] sm:$0xff]
    %v86 = vld [vmem:[#allocation5 + $0x130] sm:$0xff]
    %v87 = vld [vmem:[#allocation5 + $0x138] sm:$0xff]
    %v88 = vld [vmem:[#allocation5 + $0x140] sm:$0xff]
    %v89 = vld [vmem:[#allocation5 + $0x148] sm:$0xff]
    %v90 = vld [vmem:[#allocation5 + $0x150] sm:$0xff]
    %v91 = vld [vmem:[#allocation5 + $0x158] sm:$0xff]
    %v92 = vld [vmem:[#allocation5 + $0x160] sm:$0xff]
    %v93 = vld [vmem:[#allocation5 + $0x168] sm:$0xff]
    %v94 = vld [vmem:[#allocation5 + $0x170] sm:$0xff]
    %v95 = vld [vmem:[#allocation5 + $0x178] sm:$0xff]
    %v96 = vld [vmem:[#allocation5 + $0x180] sm:$0xff]
    %v97 = vld [vmem:[#allocation5 + $0x188] sm:$0xff]
    %v98 = vld [vmem:[#allocation5 + $0x190] sm:$0xff]
    %v99 = vld [vmem:[#allocation5 + $0x198] sm:$0xff]
    %101 = vset.pattern.permute.xlu0 0
    %102 = vperm.xlu0 %101, %v48
    %v103 = vpop.permute.xlu0 %102
    %106 = vset.pattern.permute.xlu0 0
    %107 = vperm.xlu0 %106, %v49
    %v108 = vpop.permute.xlu0 %107
    %v110 = vmul.f32 %v44, %v103
    %v111 = vmul.f32 %v45, %v103
    %v112 = vmul.f32 %v46, %v108
    %v113 = vmul.f32 %v47, %v108
    %115 = vset.pattern.permute.xlu0 0
    %116 = vperm.xlu0 %115, %v50
    %v117 = vpop.permute.xlu0 %116
    %120 = vset.pattern.permute.xlu0 0
    %121 = vperm.xlu0 %120, %v51
    %v122 = vpop.permute.xlu0 %121
    %v124 = vadd.f32 %v110, %v117
    %v125 = vadd.f32 %v111, %v117
    %v126 = vadd.f32 %v112, %v122
    %v127 = vadd.f32 %v113, %v122
    %v128 = vmax.f32 %v124, 0.0
    %v129 = vmax.f32 %v125, 0.0
    %v130 = vmax.f32 %v126, 0.0
    %v131 = vmax.f32 %v127, 0.0
    %vm132 = vcmask 130048
    %v134 = vsel %vm132, %v52, 0
    %v137 = vsel %vm132, %v53, 0
    %v140 = vsel %vm132, %v54, 0
    %v143 = vsel %vm132, %v55, 0
    %v146 = vsel %vm132, %v56, 0
    %v149 = vsel %vm132, %v57, 0
    %v152 = vsel %vm132, %v58, 0
    %v155 = vsel %vm132, %v59, 0
    %157 = vmatpush.msra.mxu0 0.0
    %158 = vmatpush.msra.mxu0 0.0
    %159 = vmatpush.msra.mxu0 0.0
    %160 = vmatpush.msra.mxu0 0.0
    %161 = vmatpush.msra.mxu0 0.0
    %162 = vmatpush.msra.mxu0 0.0
    %163 = vmatpush.msra.mxu0 0.0
    %164 = vmatpush.msra.mxu0 0.0
    %165 = vmatpush.msra.mxu0 0.0
    %166 = vmatpush.msra.mxu0 0.0
    %167 = vmatpush.msra.mxu0 0.0
    %168 = vmatpush.msra.mxu0 0.0
    %169 = vmatpush.msra.mxu0 0.0
    %170 = vmatpush.msra.mxu0 0.0
    %171 = vmatpush.msra.mxu0 %v130
    %172 = vmatpush.msra.mxu0 %v128
    %173 = vmatmul.f32.gmra.mxu0 %v134
    %v174 = vpop.f32.mrf.mxu0
    %v175 = vadd.f32 0.0, %v174
    %176 = vmatmul.f32.gmra.mxu0 %v137
    %v177 = vpop.f32.mrf.mxu0
    %v178 = vadd.f32 0.0, %v177
    %179 = vmatmul.f32.gmra.mxu0 %v140
    %v180 = vpop.f32.mrf.mxu0
    %v181 = vadd.f32 0.0, %v180
    %182 = vmatmul.f32.gmra.mxu0 %v143
    %v183 = vpop.f32.mrf.mxu0
    %v184 = vadd.f32 0.0, %v183
    %185 = vmatmul.f32.gmra.mxu0 %v146
    %v186 = vpop.f32.mrf.mxu0
    %v187 = vadd.f32 0.0, %v186
    %188 = vmatmul.f32.gmra.mxu0 %v149
    %v189 = vpop.f32.mrf.mxu0
    %v190 = vadd.f32 0.0, %v189
    %191 = vmatmul.f32.gmra.mxu0 %v152
    %v192 = vpop.f32.mrf.mxu0
    %v193 = vadd.f32 0.0, %v192
    %194 = vmatmul.f32.gmra.mxu0 %v155
    %v195 = vpop.f32.mrf.mxu0
    %v196 = vadd.f32 0.0, %v195
    %197 = vdwg.mxu0
    %198 = vmatpush.msra.mxu0 0.0
    %199 = vmatpush.msra.mxu0 0.0
    %200 = vmatpush.msra.mxu0 0.0
    %201 = vmatpush.msra.mxu0 0.0
    %202 = vmatpush.msra.mxu0 0.0
    %203 = vmatpush.msra.mxu0 0.0
    %204 = vmatpush.msra.mxu0 0.0
    %205 = vmatpush.msra.mxu0 0.0
    %206 = vmatpush.msra.mxu0 0.0
    %207 = vmatpush.msra.mxu0 0.0
    %208 = vmatpush.msra.mxu0 0.0
    %209 = vmatpush.msra.mxu0 0.0
    %210 = vmatpush.msra.mxu0 0.0
    %211 = vmatpush.msra.mxu0 0.0
    %212 = vmatpush.msra.mxu0 %v131
    %213 = vmatpush.msra.mxu0 %v129
    %214 = vmatmul.f32.gmra.mxu0 %v134
    %v215 = vpop.f32.mrf.mxu0
    %v216 = vadd.f32 0.0, %v215
    %217 = vmatmul.f32.gmra.mxu0 %v137
    %v218 = vpop.f32.mrf.mxu0
    %v219 = vadd.f32 0.0, %v218
    %220 = vmatmul.f32.gmra.mxu0 %v140
    %v221 = vpop.f32.mrf.mxu0
    %v222 = vadd.f32 0.0, %v221
    %223 = vmatmul.f32.gmra.mxu0 %v143
    %v224 = vpop.f32.mrf.mxu0
    %v225 = vadd.f32 0.0, %v224
    %226 = vmatmul.f32.gmra.mxu0 %v146
    %v227 = vpop.f32.mrf.mxu0
    %v228 = vadd.f32 0.0, %v227
    %229 = vmatmul.f32.gmra.mxu0 %v149
    %v230 = vpop.f32.mrf.mxu0
    %v231 = vadd.f32 0.0, %v230
    %232 = vmatmul.f32.gmra.mxu0 %v152
    %v233 = vpop.f32.mrf.mxu0
    %v234 = vadd.f32 0.0, %v233
    %235 = vmatmul.f32.gmra.mxu0 %v155
    %v236 = vpop.f32.mrf.mxu0
    %v237 = vadd.f32 0.0, %v236
    %238 = vdwg.mxu0
    %240 = vset.pattern.permute.xlu0 0
    %241 = vperm.xlu0 %240, %v60
    %v242 = vpop.permute.xlu0 %241
    %245 = vset.pattern.permute.xlu0 0
    %246 = vperm.xlu0 %245, %v61
    %v247 = vpop.permute.xlu0 %246
    %250 = vset.pattern.permute.xlu0 0
    %251 = vperm.xlu0 %250, %v62
    %v252 = vpop.permute.xlu0 %251
    %255 = vset.pattern.permute.xlu0 0
    %256 = vperm.xlu0 %255, %v63
    %v257 = vpop.permute.xlu0 %256
    %260 = vset.pattern.permute.xlu0 0
    %261 = vperm.xlu0 %260, %v64
    %v262 = vpop.permute.xlu0 %261
    %265 = vset.pattern.permute.xlu0 0
    %266 = vperm.xlu0 %265, %v65
    %v267 = vpop.permute.xlu0 %266
    %270 = vset.pattern.permute.xlu0 0
    %271 = vperm.xlu0 %270, %v66
    %v272 = vpop.permute.xlu0 %271
    %275 = vset.pattern.permute.xlu0 0
    %276 = vperm.xlu0 %275, %v67
    %v277 = vpop.permute.xlu0 %276
    %v279 = vmul.f32 %v175, %v242
    %v280 = vmul.f32 %v216, %v242
    %v281 = vmul.f32 %v178, %v247
    %v282 = vmul.f32 %v219, %v247
    %v283 = vmul.f32 %v181, %v252
    %v284 = vmul.f32 %v222, %v252
    %v285 = vmul.f32 %v184, %v257
    %v286 = vmul.f32 %v225, %v257
    %v287 = vmul.f32 %v187, %v262
    %v288 = vmul.f32 %v228, %v262
    %v289 = vmul.f32 %v190, %v267
    %v290 = vmul.f32 %v231, %v267
    %v291 = vmul.f32 %v193, %v272
    %v292 = vmul.f32 %v234, %v272
    %v293 = vmul.f32 %v196, %v277
    %v294 = vmul.f32 %v237, %v277
    %296 = vset.pattern.permute.xlu0 0
    %297 = vperm.xlu0 %296, %v68
    %v298 = vpop.permute.xlu0 %297
    %301 = vset.pattern.permute.xlu0 0
    %302 = vperm.xlu0 %301, %v69
    %v303 = vpop.permute.xlu0 %302
    %306 = vset.pattern.permute.xlu0 0
    %307 = vperm.xlu0 %306, %v70
    %v308 = vpop.permute.xlu0 %307
    %311 = vset.pattern.permute.xlu0 0
    %312 = vperm.xlu0 %311, %v71
    %v313 = vpop.permute.xlu0 %312
    %316 = vset.pattern.permute.xlu0 0
    %317 = vperm.xlu0 %316, %v72
    %v318 = vpop.permute.xlu0 %317
    %321 = vset.pattern.permute.xlu0 0
    %322 = vperm.xlu0 %321, %v73
    %v323 = vpop.permute.xlu0 %322
    %326 = vset.pattern.permute.xlu0 0
    %327 = vperm.xlu0 %326, %v74
    %v328 = vpop.permute.xlu0 %327
    %331 = vset.pattern.permute.xlu0 0
    %332 = vperm.xlu0 %331, %v75
    %v333 = vpop.permute.xlu0 %332
    %v335 = vadd.f32 %v279, %v298
    %v336 = vadd.f32 %v280, %v298
    %v337 = vadd.f32 %v281, %v303
    %v338 = vadd.f32 %v282, %v303
    %v339 = vadd.f32 %v283, %v308
    %v340 = vadd.f32 %v284, %v308
    %v341 = vadd.f32 %v285, %v313
    %v342 = vadd.f32 %v286, %v313
    %v343 = vadd.f32 %v287, %v318
    %v344 = vadd.f32 %v288, %v318
    %v345 = vadd.f32 %v289, %v323
    %v346 = vadd.f32 %v290, %v323
    %v347 = vadd.f32 %v291, %v328
    %v348 = vadd.f32 %v292, %v328
    %v349 = vadd.f32 %v293, %v333
    %v350 = vadd.f32 %v294, %v333
    %v351 = vmax.f32 %v335, 0.0
    %v352 = vmax.f32 %v336, 0.0
    %v353 = vmax.f32 %v337, 0.0
    %v354 = vmax.f32 %v338, 0.0
    %v355 = vmax.f32 %v339, 0.0
    %v356 = vmax.f32 %v340, 0.0
    %v357 = vmax.f32 %v341, 0.0
    %v358 = vmax.f32 %v342, 0.0
    %v359 = vmax.f32 %v343, 0.0
    %v360 = vmax.f32 %v344, 0.0
    %v361 = vmax.f32 %v345, 0.0
    %v362 = vmax.f32 %v346, 0.0
    %v363 = vmax.f32 %v347, 0.0
    %v364 = vmax.f32 %v348, 0.0
    %v365 = vmax.f32 %v349, 0.0
    %v366 = vmax.f32 %v350, 0.0
    %v368 = vsel %vm132, %v84, 0
    %v371 = vsel %vm132, %v85, 0
    %v374 = vsel %vm132, %v86, 0
    %v377 = vsel %vm132, %v87, 0
    %v380 = vsel %vm132, %v88, 0
    %v383 = vsel %vm132, %v89, 0
    %v386 = vsel %vm132, %v90, 0
    %v389 = vsel %vm132, %v91, 0
    %391 = vmatpush.msra.mxu0 0.0
    %392 = vmatpush.msra.mxu0 0.0
    %393 = vmatpush.msra.mxu0 0.0
    %394 = vmatpush.msra.mxu0 0.0
    %395 = vmatpush.msra.mxu0 0.0
    %396 = vmatpush.msra.mxu0 0.0
    %397 = vmatpush.msra.mxu0 0.0
    %398 = vmatpush.msra.mxu0 0.0
    %399 = vmatpush.msra.mxu0 0.0
    %400 = vmatpush.msra.mxu0 0.0
    %401 = vmatpush.msra.mxu0 0.0
    %402 = vmatpush.msra.mxu0 0.0
    %403 = vmatpush.msra.mxu0 0.0
    %404 = vmatpush.msra.mxu0 0.0
    %405 = vmatpush.msra.mxu0 %v46
    %406 = vmatpush.msra.mxu0 %v44
    %407 = vmatmul.f32.gmra.mxu0 %v368
    %v408 = vpop.f32.mrf.mxu0
    %v409 = vadd.f32 0.0, %v408
    %410 = vmatmul.f32.gmra.mxu0 %v371
    %v411 = vpop.f32.mrf.mxu0
    %v412 = vadd.f32 0.0, %v411
    %413 = vmatmul.f32.gmra.mxu0 %v374
    %v414 = vpop.f32.mrf.mxu0
    %v415 = vadd.f32 0.0, %v414
    %416 = vmatmul.f32.gmra.mxu0 %v377
    %v417 = vpop.f32.mrf.mxu0
    %v418 = vadd.f32 0.0, %v417
    %419 = vmatmul.f32.gmra.mxu0 %v380
    %v420 = vpop.f32.mrf.mxu0
    %v421 = vadd.f32 0.0, %v420
    %422 = vmatmul.f32.gmra.mxu0 %v383
    %v423 = vpop.f32.mrf.mxu0
    %v424 = vadd.f32 0.0, %v423
    %425 = vmatmul.f32.gmra.mxu0 %v386
    %v426 = vpop.f32.mrf.mxu0
    %v427 = vadd.f32 0.0, %v426
    %428 = vmatmul.f32.gmra.mxu0 %v389
    %v429 = vpop.f32.mrf.mxu0
    %v430 = vadd.f32 0.0, %v429
    %431 = vdwg.mxu0
    %432 = vmatpush.msra.mxu0 0.0
    %433 = vmatpush.msra.mxu0 0.0
    %434 = vmatpush.msra.mxu0 0.0
    %435 = vmatpush.msra.mxu0 0.0
    %436 = vmatpush.msra.mxu0 0.0
    %437 = vmatpush.msra.mxu0 0.0
    %438 = vmatpush.msra.mxu0 0.0
    %439 = vmatpush.msra.mxu0 0.0
    %440 = vmatpush.msra.mxu0 0.0
    %441 = vmatpush.msra.mxu0 0.0
    %442 = vmatpush.msra.mxu0 0.0
    %443 = vmatpush.msra.mxu0 0.0
    %444 = vmatpush.msra.mxu0 0.0
    %445 = vmatpush.msra.mxu0 0.0
    %446 = vmatpush.msra.mxu0 %v47
    %447 = vmatpush.msra.mxu0 %v45
    %448 = vmatmul.f32.gmra.mxu0 %v368
    %v449 = vpop.f32.mrf.mxu0
    %v450 = vadd.f32 0.0, %v449
    %451 = vmatmul.f32.gmra.mxu0 %v371
    %v452 = vpop.f32.mrf.mxu0
    %v453 = vadd.f32 0.0, %v452
    %454 = vmatmul.f32.gmra.mxu0 %v374
    %v455 = vpop.f32.mrf.mxu0
    %v456 = vadd.f32 0.0, %v455
    %457 = vmatmul.f32.gmra.mxu0 %v377
    %v458 = vpop.f32.mrf.mxu0
    %v459 = vadd.f32 0.0, %v458
    %460 = vmatmul.f32.gmra.mxu0 %v380
    %v461 = vpop.f32.mrf.mxu0
    %v462 = vadd.f32 0.0, %v461
    %463 = vmatmul.f32.gmra.mxu0 %v383
    %v464 = vpop.f32.mrf.mxu0
    %v465 = vadd.f32 0.0, %v464
    %466 = vmatmul.f32.gmra.mxu0 %v386
    %v467 = vpop.f32.mrf.mxu0
    %v468 = vadd.f32 0.0, %v467
    %469 = vmatmul.f32.gmra.mxu0 %v389
    %v470 = vpop.f32.mrf.mxu0
    %v471 = vadd.f32 0.0, %v470
    %472 = vdwg.mxu0
    %vm473 = vcmask 523264
    %v475 = vsel %vm473, %v76, 0
    %v478 = vsel %vm473, %v77, 0
    %v481 = vsel %vm473, %v78, 0
    %v484 = vsel %vm473, %v79, 0
    %v487 = vsel %vm473, %v80, 0
    %v490 = vsel %vm473, %v81, 0
    %v493 = vsel %vm473, %v82, 0
    %v496 = vsel %vm473, %v83, 0
    %498 = vmatpush.msra.mxu0 0.0
    %499 = vmatpush.msra.mxu0 0.0
    %500 = vmatpush.msra.mxu0 0.0
    %501 = vmatpush.msra.mxu0 0.0
    %502 = vmatpush.msra.mxu0 0.0
    %503 = vmatpush.msra.mxu0 0.0
    %504 = vmatpush.msra.mxu0 0.0
    %505 = vmatpush.msra.mxu0 0.0
    %506 = vmatpush.msra.mxu0 %v365
    %507 = vmatpush.msra.mxu0 %v363
    %508 = vmatpush.msra.mxu0 %v361
    %509 = vmatpush.msra.mxu0 %v359
    %510 = vmatpush.msra.mxu0 %v357
    %511 = vmatpush.msra.mxu0 %v355
    %512 = vmatpush.msra.mxu0 %v353
    %513 = vmatpush.msra.mxu0 %v351
    %514 = vmatmul.f32.gmra.mxu0 %v475
    %v515 = vpop.f32.mrf.mxu0
    %v516 = vadd.f32 %v409, %v515
    %517 = vmatmul.f32.gmra.mxu0 %v478
    %v518 = vpop.f32.mrf.mxu0
    %v519 = vadd.f32 %v412, %v518
    %520 = vmatmul.f32.gmra.mxu0 %v481
    %v521 = vpop.f32.mrf.mxu0
    %v522 = vadd.f32 %v415, %v521
    %523 = vmatmul.f32.gmra.mxu0 %v484
    %v524 = vpop.f32.mrf.mxu0
    %v525 = vadd.f32 %v418, %v524
    %526 = vmatmul.f32.gmra.mxu0 %v487
    %v527 = vpop.f32.mrf.mxu0
    %v528 = vadd.f32 %v421, %v527
    %529 = vmatmul.f32.gmra.mxu0 %v490
    %v530 = vpop.f32.mrf.mxu0
    %v531 = vadd.f32 %v424, %v530
    %532 = vmatmul.f32.gmra.mxu0 %v493
    %v533 = vpop.f32.mrf.mxu0
    %v534 = vadd.f32 %v427, %v533
    %535 = vmatmul.f32.gmra.mxu0 %v496
    %v536 = vpop.f32.mrf.mxu0
    %v537 = vadd.f32 %v430, %v536
    %538 = vdwg.mxu0
    %539 = vmatpush.msra.mxu0 0.0
    %540 = vmatpush.msra.mxu0 0.0
    %541 = vmatpush.msra.mxu0 0.0
    %542 = vmatpush.msra.mxu0 0.0
    %543 = vmatpush.msra.mxu0 0.0
    %544 = vmatpush.msra.mxu0 0.0
    %545 = vmatpush.msra.mxu0 0.0
    %546 = vmatpush.msra.mxu0 0.0
    %547 = vmatpush.msra.mxu0 %v366
    %548 = vmatpush.msra.mxu0 %v364
    %549 = vmatpush.msra.mxu0 %v362
    %550 = vmatpush.msra.mxu0 %v360
    %551 = vmatpush.msra.mxu0 %v358
    %552 = vmatpush.msra.mxu0 %v356
    %553 = vmatpush.msra.mxu0 %v354
    %554 = vmatpush.msra.mxu0 %v352
    %555 = vmatmul.f32.gmra.mxu0 %v475
    %v556 = vpop.f32.mrf.mxu0
    %v557 = vadd.f32 %v450, %v556
    %558 = vmatmul.f32.gmra.mxu0 %v478
    %v559 = vpop.f32.mrf.mxu0
    %v560 = vadd.f32 %v453, %v559
    %561 = vmatmul.f32.gmra.mxu0 %v481
    %v562 = vpop.f32.mrf.mxu0
    %v563 = vadd.f32 %v456, %v562
    %564 = vmatmul.f32.gmra.mxu0 %v484
    %v565 = vpop.f32.mrf.mxu0
    %v566 = vadd.f32 %v459, %v565
    %567 = vmatmul.f32.gmra.mxu0 %v487
    %v568 = vpop.f32.mrf.mxu0
    %v569 = vadd.f32 %v462, %v568
    %570 = vmatmul.f32.gmra.mxu0 %v490
    %v571 = vpop.f32.mrf.mxu0
    %v572 = vadd.f32 %v465, %v571
    %573 = vmatmul.f32.gmra.mxu0 %v493
    %v574 = vpop.f32.mrf.mxu0
    %v575 = vadd.f32 %v468, %v574
    %576 = vmatmul.f32.gmra.mxu0 %v496
    %v577 = vpop.f32.mrf.mxu0
    %v578 = vadd.f32 %v471, %v577
    %579 = vdwg.mxu0
    %581 = vset.pattern.permute.xlu0 0
    %582 = vperm.xlu0 %581, %v92
    %v583 = vpop.permute.xlu0 %582
    %586 = vset.pattern.permute.xlu0 0
    %587 = vperm.xlu0 %586, %v93
    %v588 = vpop.permute.xlu0 %587
    %591 = vset.pattern.permute.xlu0 0
    %592 = vperm.xlu0 %591, %v94
    %v593 = vpop.permute.xlu0 %592
    %596 = vset.pattern.permute.xlu0 0
    %597 = vperm.xlu0 %596, %v95
    %v598 = vpop.permute.xlu0 %597
    %601 = vset.pattern.permute.xlu0 0
    %602 = vperm.xlu0 %601, %v96
    %v603 = vpop.permute.xlu0 %602
    %606 = vset.pattern.permute.xlu0 0
    %607 = vperm.xlu0 %606, %v97
    %v608 = vpop.permute.xlu0 %607
    %611 = vset.pattern.permute.xlu0 0
    %612 = vperm.xlu0 %611, %v98
    %v613 = vpop.permute.xlu0 %612
    %616 = vset.pattern.permute.xlu0 0
    %617 = vperm.xlu0 %616, %v99
    %v618 = vpop.permute.xlu0 %617
    %v620 = vadd.f32 %v516, %v583
    %v621 = vadd.f32 %v557, %v583
    %v622 = vadd.f32 %v519, %v588
    %v623 = vadd.f32 %v560, %v588
    %v624 = vadd.f32 %v522, %v593
    %v625 = vadd.f32 %v563, %v593
    %v626 = vadd.f32 %v525, %v598
    %v627 = vadd.f32 %v566, %v598
    %v628 = vadd.f32 %v528, %v603
    %v629 = vadd.f32 %v569, %v603
    %v630 = vadd.f32 %v531, %v608
    %v631 = vadd.f32 %v572, %v608
    %v632 = vadd.f32 %v534, %v613
    %v633 = vadd.f32 %v575, %v613
    %v634 = vadd.f32 %v537, %v618
    %v635 = vadd.f32 %v578, %v618
    %v636 = vmax.f32 %v620, 0.0
    %v637 = vmax.f32 %v621, 0.0
    %v638 = vmax.f32 %v622, 0.0
    %v639 = vmax.f32 %v623, 0.0
    %v640 = vmax.f32 %v624, 0.0
    %v641 = vmax.f32 %v625, 0.0
    %v642 = vmax.f32 %v626, 0.0
    %v643 = vmax.f32 %v627, 0.0
    %v644 = vmax.f32 %v628, 0.0
    %v645 = vmax.f32 %v629, 0.0
    %v646 = vmax.f32 %v630, 0.0
    %v647 = vmax.f32 %v631, 0.0
    %v648 = vmax.f32 %v632, 0.0
    %v649 = vmax.f32 %v633, 0.0
    %v650 = vmax.f32 %v634, 0.0
    %v651 = vmax.f32 %v635, 0.0
    %v652 = vld [vmem:[#allocation5 + $0x1a0] sm:$0xff]
    %v653 = vld [vmem:[#allocation5 + $0x1a8] sm:$0xff]
    %v654 = vld [vmem:[#allocation5 + $0x1b0] sm:$0xff]
    %v655 = vld [vmem:[#allocation5 + $0x1b8] sm:$0xff]
    %v656 = vld [vmem:[#allocation5 + $0x1c0] sm:$0xff]
    %v657 = vld [vmem:[#allocation5 + $0x1c8] sm:$0xff]
    %v658 = vld [vmem:[#allocation5 + $0x1d0] sm:$0xff]
    %v659 = vld [vmem:[#allocation5 + $0x1d8] sm:$0xff]
    %v660 = vld [vmem:[#allocation5 + $0x1e0] sm:$0xff]
    %v661 = vld [vmem:[#allocation5 + $0x1e8] sm:$0xff]
    %v662 = vld [vmem:[#allocation5 + $0x1f0] sm:$0xff]
    %v663 = vld [vmem:[#allocation5 + $0x1f8] sm:$0xff]
    %v664 = vld [vmem:[#allocation5 + $0x200] sm:$0xff]
    %v665 = vld [vmem:[#allocation5 + $0x208] sm:$0xff]
    %v666 = vld [vmem:[#allocation5 + $0x210] sm:$0xff]
    %v667 = vld [vmem:[#allocation5 + $0x218] sm:$0xff]
    %v668 = vld [vmem:[#allocation5 + $0x220] sm:$0xff]
    %v669 = vld [vmem:[#allocation5 + $0x228] sm:$0xff]
    %v670 = vld [vmem:[#allocation5 + $0x230] sm:$0xff]
    %v671 = vld [vmem:[#allocation5 + $0x238] sm:$0xff]
    %v672 = vld [vmem:[#allocation5 + $0x240] sm:$0xff]
    %v673 = vld [vmem:[#allocation5 + $0x248] sm:$0xff]
    %v674 = vld [vmem:[#allocation5 + $0x250] sm:$0xff]
    %v675 = vld [vmem:[#allocation5 + $0x258] sm:$0xff]
    %v676 = vld [vmem:[#allocation5 + $0x260] sm:$0xff]
    %v677 = vld [vmem:[#allocation5 + $0x268] sm:$0xff]
    %v678 = vld [vmem:[#allocation5 + $0x270] sm:$0xff]
    %v679 = vld [vmem:[#allocation5 + $0x278] sm:$0xff]
    %v680 = vld [vmem:[#allocation5 + $0x280] sm:$0xff]
    %v681 = vld [vmem:[#allocation5 + $0x288] sm:$0xff]
    %v682 = vld [vmem:[#allocation5 + $0x290] sm:$0xff]
    %v683 = vld [vmem:[#allocation5 + $0x298] sm:$0xff]
    %v684 = vld [vmem:[#allocation5 + $0x2a0] sm:$0xff]
    %v685 = vld [vmem:[#allocation5 + $0x2a8] sm:$0xff]
    %v686 = vld [vmem:[#allocation5 + $0x2b0] sm:$0xff]
    %v687 = vld [vmem:[#allocation5 + $0x2b8] sm:$0xff]
    %v688 = vld [vmem:[#allocation5 + $0x2c0] sm:$0xff]
    %v689 = vld [vmem:[#allocation5 + $0x2c8] sm:$0xff]
    %v690 = vld [vmem:[#allocation5 + $0x2d0] sm:$0xff]
    %v691 = vld [vmem:[#allocation5 + $0x2d8] sm:$0xff]
    %693 = vset.pattern.permute.xlu0 0
    %694 = vperm.xlu0 %693, %v652
    %v695 = vpop.permute.xlu0 %694
    %698 = vset.pattern.permute.xlu0 0
    %699 = vperm.xlu0 %698, %v653
    %v700 = vpop.permute.xlu0 %699
    %703 = vset.pattern.permute.xlu0 0
    %704 = vperm.xlu0 %703, %v654
    %v705 = vpop.permute.xlu0 %704
    %708 = vset.pattern.permute.xlu0 0
    %709 = vperm.xlu0 %708, %v655
    %v710 = vpop.permute.xlu0 %709
    %713 = vset.pattern.permute.xlu0 0
    %714 = vperm.xlu0 %713, %v656
    %v715 = vpop.permute.xlu0 %714
    %718 = vset.pattern.permute.xlu0 0
    %719 = vperm.xlu0 %718, %v657
    %v720 = vpop.permute.xlu0 %719
    %723 = vset.pattern.permute.xlu0 0
    %724 = vperm.xlu0 %723, %v658
    %v725 = vpop.permute.xlu0 %724
    %728 = vset.pattern.permute.xlu0 0
    %729 = vperm.xlu0 %728, %v659
    %v730 = vpop.permute.xlu0 %729
    %v732 = vmul.f32 %v636, %v695
    %v733 = vmul.f32 %v637, %v695
    %v734 = vmul.f32 %v638, %v700
    %v735 = vmul.f32 %v639, %v700
    %v736 = vmul.f32 %v640, %v705
    %v737 = vmul.f32 %v641, %v705
    %v738 = vmul.f32 %v642, %v710
    %v739 = vmul.f32 %v643, %v710
    %v740 = vmul.f32 %v644, %v715
    %v741 = vmul.f32 %v645, %v715
    %v742 = vmul.f32 %v646, %v720
    %v743 = vmul.f32 %v647, %v720
    %v744 = vmul.f32 %v648, %v725
    %v745 = vmul.f32 %v649, %v725
    %v746 = vmul.f32 %v650, %v730
    %v747 = vmul.f32 %v651, %v730
    %749 = vset.pattern.permute.xlu0 0
    %750 = vperm.xlu0 %749, %v660
    %v751 = vpop.permute.xlu0 %750
    %754 = vset.pattern.permute.xlu0 0
    %755 = vperm.xlu0 %754, %v661
    %v756 = vpop.permute.xlu0 %755
    %759 = vset.pattern.permute.xlu0 0
    %760 = vperm.xlu0 %759, %v662
    %v761 = vpop.permute.xlu0 %760
    %764 = vset.pattern.permute.xlu0 0
    %765 = vperm.xlu0 %764, %v663
    %v766 = vpop.permute.xlu0 %765
    %769 = vset.pattern.permute.xlu0 0
    %770 = vperm.xlu0 %769, %v664
    %v771 = vpop.permute.xlu0 %770
    %774 = vset.pattern.permute.xlu0 0
    %775 = vperm.xlu0 %774, %v665
    %v776 = vpop.permute.xlu0 %775
    %779 = vset.pattern.permute.xlu0 0
    %780 = vperm.xlu0 %779, %v666
    %v781 = vpop.permute.xlu0 %780
    %784 = vset.pattern.permute.xlu0 0
    %785 = vperm.xlu0 %784, %v667
    %v786 = vpop.permute.xlu0 %785
    %v788 = vadd.f32 %v732, %v751
    %v789 = vadd.f32 %v733, %v751
    %v790 = vadd.f32 %v734, %v756
    %v791 = vadd.f32 %v735, %v756
    %v792 = vadd.f32 %v736, %v761
    %v793 = vadd.f32 %v737, %v761
    %v794 = vadd.f32 %v738, %v766
    %v795 = vadd.f32 %v739, %v766
    %v796 = vadd.f32 %v740, %v771
    %v797 = vadd.f32 %v741, %v771
    %v798 = vadd.f32 %v742, %v776
    %v799 = vadd.f32 %v743, %v776
    %v800 = vadd.f32 %v744, %v781
    %v801 = vadd.f32 %v745, %v781
    %v802 = vadd.f32 %v746, %v786
    %v803 = vadd.f32 %v747, %v786
    %v804 = vmax.f32 %v788, 0.0
    %v805 = vmax.f32 %v789, 0.0
    %v806 = vmax.f32 %v790, 0.0
    %v807 = vmax.f32 %v791, 0.0
    %v808 = vmax.f32 %v792, 0.0
    %v809 = vmax.f32 %v793, 0.0
    %v810 = vmax.f32 %v794, 0.0
    %v811 = vmax.f32 %v795, 0.0
    %v812 = vmax.f32 %v796, 0.0
    %v813 = vmax.f32 %v797, 0.0
    %v814 = vmax.f32 %v798, 0.0
    %v815 = vmax.f32 %v799, 0.0
    %v816 = vmax.f32 %v800, 0.0
    %v817 = vmax.f32 %v801, 0.0
    %v818 = vmax.f32 %v802, 0.0
    %v819 = vmax.f32 %v803, 0.0
    %v821 = vsel %vm473, %v668, 0
    %v824 = vsel %vm473, %v669, 0
    %v827 = vsel %vm473, %v670, 0
    %v830 = vsel %vm473, %v671, 0
    %832 = vmatpush.msra.mxu0 0.0
    %833 = vmatpush.msra.mxu0 0.0
    %834 = vmatpush.msra.mxu0 0.0
    %835 = vmatpush.msra.mxu0 0.0
    %836 = vmatpush.msra.mxu0 0.0
    %837 = vmatpush.msra.mxu0 0.0
    %838 = vmatpush.msra.mxu0 0.0
    %839 = vmatpush.msra.mxu0 0.0
    %840 = vmatpush.msra.mxu0 %v818
    %841 = vmatpush.msra.mxu0 %v816
    %842 = vmatpush.msra.mxu0 %v814
    %843 = vmatpush.msra.mxu0 %v812
    %844 = vmatpush.msra.mxu0 %v810
    %845 = vmatpush.msra.mxu0 %v808
    %846 = vmatpush.msra.mxu0 %v806
    %847 = vmatpush.msra.mxu0 %v804
    %848 = vmatmul.f32.gmra.mxu0 %v821
    %v849 = vpop.f32.mrf.mxu0
    %v850 = vadd.f32 0.0, %v849
    %851 = vmatmul.f32.gmra.mxu0 %v824
    %v852 = vpop.f32.mrf.mxu0
    %v853 = vadd.f32 0.0, %v852
    %854 = vmatmul.f32.gmra.mxu0 %v827
    %v855 = vpop.f32.mrf.mxu0
    %v856 = vadd.f32 0.0, %v855
    %857 = vmatmul.f32.gmra.mxu0 %v830
    %v858 = vpop.f32.mrf.mxu0
    %v859 = vadd.f32 0.0, %v858
    %860 = vdwg.mxu0
    %861 = vmatpush.msra.mxu0 0.0
    %862 = vmatpush.msra.mxu0 0.0
    %863 = vmatpush.msra.mxu0 0.0
    %864 = vmatpush.msra.mxu0 0.0
    %865 = vmatpush.msra.mxu0 0.0
    %866 = vmatpush.msra.mxu0 0.0
    %867 = vmatpush.msra.mxu0 0.0
    %868 = vmatpush.msra.mxu0 0.0
    %869 = vmatpush.msra.mxu0 %v819
    %870 = vmatpush.msra.mxu0 %v817
    %871 = vmatpush.msra.mxu0 %v815
    %872 = vmatpush.msra.mxu0 %v813
    %873 = vmatpush.msra.mxu0 %v811
    %874 = vmatpush.msra.mxu0 %v809
    %875 = vmatpush.msra.mxu0 %v807
    %876 = vmatpush.msra.mxu0 %v805
    %877 = vmatmul.f32.gmra.mxu0 %v821
    %v878 = vpop.f32.mrf.mxu0
    %v879 = vadd.f32 0.0, %v878
    %880 = vmatmul.f32.gmra.mxu0 %v824
    %v881 = vpop.f32.mrf.mxu0
    %v882 = vadd.f32 0.0, %v881
    %883 = vmatmul.f32.gmra.mxu0 %v827
    %v884 = vpop.f32.mrf.mxu0
    %v885 = vadd.f32 0.0, %v884
    %886 = vmatmul.f32.gmra.mxu0 %v830
    %v887 = vpop.f32.mrf.mxu0
    %v888 = vadd.f32 0.0, %v887
    %889 = vdwg.mxu0
    %891 = vset.pattern.permute.xlu0 0
    %892 = vperm.xlu0 %891, %v672
    %v893 = vpop.permute.xlu0 %892
    %896 = vset.pattern.permute.xlu0 0
    %897 = vperm.xlu0 %896, %v673
    %v898 = vpop.permute.xlu0 %897
    %901 = vset.pattern.permute.xlu0 0
    %902 = vperm.xlu0 %901, %v674
    %v903 = vpop.permute.xlu0 %902
    %906 = vset.pattern.permute.xlu0 0
    %907 = vperm.xlu0 %906, %v675
    %v908 = vpop.permute.xlu0 %907
    %v910 = vmul.f32 %v850, %v893
    %v911 = vmul.f32 %v879, %v893
    %v912 = vmul.f32 %v853, %v898
    %v913 = vmul.f32 %v882, %v898
    %v914 = vmul.f32 %v856, %v903
    %v915 = vmul.f32 %v885, %v903
    %v916 = vmul.f32 %v859, %v908
    %v917 = vmul.f32 %v888, %v908
    %919 = vset.pattern.permute.xlu0 0
    %920 = vperm.xlu0 %919, %v676
    %v921 = vpop.permute.xlu0 %920
    %924 = vset.pattern.permute.xlu0 0
    %925 = vperm.xlu0 %924, %v677
    %v926 = vpop.permute.xlu0 %925
    %929 = vset.pattern.permute.xlu0 0
    %930 = vperm.xlu0 %929, %v678
    %v931 = vpop.permute.xlu0 %930
    %934 = vset.pattern.permute.xlu0 0
    %935 = vperm.xlu0 %934, %v679
    %v936 = vpop.permute.xlu0 %935
    %v938 = vadd.f32 %v910, %v921
    %v939 = vadd.f32 %v911, %v921
    %v940 = vadd.f32 %v912, %v926
    %v941 = vadd.f32 %v913, %v926
    %v942 = vadd.f32 %v914, %v931
    %v943 = vadd.f32 %v915, %v931
    %v944 = vadd.f32 %v916, %v936
    %v945 = vadd.f32 %v917, %v936
    %v946 = vmax.f32 %v938, 0.0
    %v947 = vmax.f32 %v939, 0.0
    %v948 = vmax.f32 %v940, 0.0
    %v949 = vmax.f32 %v941, 0.0
    %v950 = vmax.f32 %v942, 0.0
    %v951 = vmax.f32 %v943, 0.0
    %v952 = vmax.f32 %v944, 0.0
    %v953 = vmax.f32 %v945, 0.0
    %v955 = vsel %vm473, %v684, 0
    %v958 = vsel %vm473, %v685, 0
    %v961 = vsel %vm473, %v686, 0
    %v964 = vsel %vm473, %v687, 0
    %966 = vmatpush.msra.mxu0 0.0
    %967 = vmatpush.msra.mxu0 0.0
    %968 = vmatpush.msra.mxu0 0.0
    %969 = vmatpush.msra.mxu0 0.0
    %970 = vmatpush.msra.mxu0 0.0
    %971 = vmatpush.msra.mxu0 0.0
    %972 = vmatpush.msra.mxu0 0.0
    %973 = vmatpush.msra.mxu0 0.0
    %974 = vmatpush.msra.mxu0 %v650
    %975 = vmatpush.msra.mxu0 %v648
    %976 = vmatpush.msra.mxu0 %v646
    %977 = vmatpush.msra.mxu0 %v644
    %978 = vmatpush.msra.mxu0 %v642
    %979 = vmatpush.msra.mxu0 %v640
    %980 = vmatpush.msra.mxu0 %v638
    %981 = vmatpush.msra.mxu0 %v636
    %982 = vmatmul.f32.gmra.mxu0 %v955
    %v983 = vpop.f32.mrf.mxu0
    %v984 = vadd.f32 0.0, %v983
    %985 = vmatmul.f32.gmra.mxu0 %v958
    %v986 = vpop.f32.mrf.mxu0
    %v987 = vadd.f32 0.0, %v986
    %988 = vmatmul.f32.gmra.mxu0 %v961
    %v989 = vpop.f32.mrf.mxu0
    %v990 = vadd.f32 0.0, %v989
    %991 = vmatmul.f32.gmra.mxu0 %v964
    %v992 = vpop.f32.mrf.mxu0
    %v993 = vadd.f32 0.0, %v992
    %994 = vdwg.mxu0
    %995 = vmatpush.msra.mxu0 0.0
    %996 = vmatpush.msra.mxu0 0.0
    %997 = vmatpush.msra.mxu0 0.0
    %998 = vmatpush.msra.mxu0 0.0
    %999 = vmatpush.msra.mxu0 0.0
    %1000 = vmatpush.msra.mxu0 0.0
    %1001 = vmatpush.msra.mxu0 0.0
    %1002 = vmatpush.msra.mxu0 0.0
    %1003 = vmatpush.msra.mxu0 %v651
    %1004 = vmatpush.msra.mxu0 %v649
    %1005 = vmatpush.msra.mxu0 %v647
    %1006 = vmatpush.msra.mxu0 %v645
    %1007 = vmatpush.msra.mxu0 %v643
    %1008 = vmatpush.msra.mxu0 %v641
    %1009 = vmatpush.msra.mxu0 %v639
    %1010 = vmatpush.msra.mxu0 %v637
    %1011 = vmatmul.f32.gmra.mxu0 %v955
    %v1012 = vpop.f32.mrf.mxu0
    %v1013 = vadd.f32 0.0, %v1012
    %1014 = vmatmul.f32.gmra.mxu0 %v958
    %v1015 = vpop.f32.mrf.mxu0
    %v1016 = vadd.f32 0.0, %v1015
    %1017 = vmatmul.f32.gmra.mxu0 %v961
    %v1018 = vpop.f32.mrf.mxu0
    %v1019 = vadd.f32 0.0, %v1018
    %1020 = vmatmul.f32.gmra.mxu0 %v964
    %v1021 = vpop.f32.mrf.mxu0
    %v1022 = vadd.f32 0.0, %v1021
    %1023 = vdwg.mxu0
    %vm1024 = vcmask 261120
    %v1026 = vsel %vm1024, %v680, 0
    %v1029 = vsel %vm1024, %v681, 0
    %v1032 = vsel %vm1024, %v682, 0
    %v1035 = vsel %vm1024, %v683, 0
    %1037 = vmatpush.msra.mxu0 0.0
    %1038 = vmatpush.msra.mxu0 0.0
    %1039 = vmatpush.msra.mxu0 0.0
    %1040 = vmatpush.msra.mxu0 0.0
    %1041 = vmatpush.msra.mxu0 0.0
    %1042 = vmatpush.msra.mxu0 0.0
    %1043 = vmatpush.msra.mxu0 0.0
    %1044 = vmatpush.msra.mxu0 0.0
    %1045 = vmatpush.msra.mxu0 0.0
    %1046 = vmatpush.msra.mxu0 0.0
    %1047 = vmatpush.msra.mxu0 0.0
    %1048 = vmatpush.msra.mxu0 0.0
    %1049 = vmatpush.msra.mxu0 %v952
    %1050 = vmatpush.msra.mxu0 %v950
    %1051 = vmatpush.msra.mxu0 %v948
    %1052 = vmatpush.msra.mxu0 %v946
    %1053 = vmatmul.f32.gmra.mxu0 %v1026
    %v1054 = vpop.f32.mrf.mxu0
    %v1055 = vadd.f32 %v984, %v1054
    %1056 = vmatmul.f32.gmra.mxu0 %v1029
    %v1057 = vpop.f32.mrf.mxu0
    %v1058 = vadd.f32 %v987, %v1057
    %1059 = vmatmul.f32.gmra.mxu0 %v1032
    %v1060 = vpop.f32.mrf.mxu0
    %v1061 = vadd.f32 %v990, %v1060
    %1062 = vmatmul.f32.gmra.mxu0 %v1035
    %v1063 = vpop.f32.mrf.mxu0
    %v1064 = vadd.f32 %v993, %v1063
    %1065 = vdwg.mxu0
    %1066 = vmatpush.msra.mxu0 0.0
    %1067 = vmatpush.msra.mxu0 0.0
    %1068 = vmatpush.msra.mxu0 0.0
    %1069 = vmatpush.msra.mxu0 0.0
    %1070 = vmatpush.msra.mxu0 0.0
    %1071 = vmatpush.msra.mxu0 0.0
    %1072 = vmatpush.msra.mxu0 0.0
    %1073 = vmatpush.msra.mxu0 0.0
    %1074 = vmatpush.msra.mxu0 0.0
    %1075 = vmatpush.msra.mxu0 0.0
    %1076 = vmatpush.msra.mxu0 0.0
    %1077 = vmatpush.msra.mxu0 0.0
    %1078 = vmatpush.msra.mxu0 %v953
    %1079 = vmatpush.msra.mxu0 %v951
    %1080 = vmatpush.msra.mxu0 %v949
    %1081 = vmatpush.msra.mxu0 %v947
    %1082 = vmatmul.f32.gmra.mxu0 %v1026
    %v1083 = vpop.f32.mrf.mxu0
    %v1084 = vadd.f32 %v1013, %v1083
    %1085 = vmatmul.f32.gmra.mxu0 %v1029
    %v1086 = vpop.f32.mrf.mxu0
    %v1087 = vadd.f32 %v1016, %v1086
    %1088 = vmatmul.f32.gmra.mxu0 %v1032
    %v1089 = vpop.f32.mrf.mxu0
    %v1090 = vadd.f32 %v1019, %v1089
    %1091 = vmatmul.f32.gmra.mxu0 %v1035
    %v1092 = vpop.f32.mrf.mxu0
    %v1093 = vadd.f32 %v1022, %v1092
    %1094 = vdwg.mxu0
    %1096 = vset.pattern.permute.xlu0 0
    %1097 = vperm.xlu0 %1096, %v688
    %v1098 = vpop.permute.xlu0 %1097
    %1101 = vset.pattern.permute.xlu0 0
    %1102 = vperm.xlu0 %1101, %v689
    %v1103 = vpop.permute.xlu0 %1102
    %1106 = vset.pattern.permute.xlu0 0
    %1107 = vperm.xlu0 %1106, %v690
    %v1108 = vpop.permute.xlu0 %1107
    %1111 = vset.pattern.permute.xlu0 0
    %1112 = vperm.xlu0 %1111, %v691
    %v1113 = vpop.permute.xlu0 %1112
    %v1115 = vadd.f32 %v1055, %v1098
    %v1116 = vadd.f32 %v1084, %v1098
    %v1117 = vadd.f32 %v1058, %v1103
    %v1118 = vadd.f32 %v1087, %v1103
    %v1119 = vadd.f32 %v1061, %v1108
    %v1120 = vadd.f32 %v1090, %v1108
    %v1121 = vadd.f32 %v1064, %v1113
    %v1122 = vadd.f32 %v1093, %v1113
    %v1123 = vmax.f32 %v1115, 0.0
    %v1124 = vmax.f32 %v1116, 0.0
    %v1125 = vmax.f32 %v1117, 0.0
    %v1126 = vmax.f32 %v1118, 0.0
    %v1127 = vmax.f32 %v1119, 0.0
    %v1128 = vmax.f32 %v1120, 0.0
    %v1129 = vmax.f32 %v1121, 0.0
    %v1130 = vmax.f32 %v1122, 0.0
    %v1131 = vld [vmem:[#allocation5 + $0x2e0] sm:$0xff]
    %v1132 = vld [vmem:[#allocation5 + $0x2e8] sm:$0xff]
    %v1133 = vld [vmem:[#allocation5 + $0x2f0] sm:$0xff]
    %v1134 = vld [vmem:[#allocation5 + $0x2f8] sm:$0xff]
    %v1135 = vld [vmem:[#allocation5 + $0x300] sm:$0xff]
    %v1136 = vld [vmem:[#allocation5 + $0x308] sm:$0xff]
    %v1137 = vld [vmem:[#allocation5 + $0x310] sm:$0xff]
    %v1138 = vld [vmem:[#allocation5 + $0x318] sm:$0xff]
    %v1139 = vld [vmem:[#allocation5 + $0x320] sm:$0xff]
    %v1140 = vld [vmem:[#allocation5 + $0x328] sm:$0xff]
    %v1141 = vld [vmem:[#allocation5 + $0x330] sm:$0xff]
    %v1142 = vld [vmem:[#allocation5 + $0x338] sm:$0xff]
    %v1143 = vld [vmem:[#allocation5 + $0x340] sm:$0xff]
    %v1144 = vld [vmem:[#allocation5 + $0x348] sm:$0xff]
    %v1145 = vld [vmem:[#allocation5 + $0x350] sm:$0xff]
    %v1146 = vld [vmem:[#allocation5 + $0x358] sm:$0xff]
    %v1147 = vld [vmem:[#allocation5 + $0x360] sm:$0xff]
    %v1148 = vld [vmem:[#allocation5 + $0x368] sm:$0xff]
    %v1149 = vld [vmem:[#allocation5 + $0x370] sm:$0xff]
    %v1150 = vld [vmem:[#allocation5 + $0x378] sm:$0xff]
    %1152 = vset.pattern.permute.xlu0 0
    %1153 = vperm.xlu0 %1152, %v1131
    %v1154 = vpop.permute.xlu0 %1153
    %1157 = vset.pattern.permute.xlu0 0
    %1158 = vperm.xlu0 %1157, %v1132
    %v1159 = vpop.permute.xlu0 %1158
    %1162 = vset.pattern.permute.xlu0 0
    %1163 = vperm.xlu0 %1162, %v1133
    %v1164 = vpop.permute.xlu0 %1163
    %1167 = vset.pattern.permute.xlu0 0
    %1168 = vperm.xlu0 %1167, %v1134
    %v1169 = vpop.permute.xlu0 %1168
    %v1171 = vmul.f32 %v1123, %v1154
    %v1172 = vmul.f32 %v1124, %v1154
    %v1173 = vmul.f32 %v1125, %v1159
    %v1174 = vmul.f32 %v1126, %v1159
    %v1175 = vmul.f32 %v1127, %v1164
    %v1176 = vmul.f32 %v1128, %v1164
    %v1177 = vmul.f32 %v1129, %v1169
    %v1178 = vmul.f32 %v1130, %v1169
    %1180 = vset.pattern.permute.xlu0 0
    %1181 = vperm.xlu0 %1180, %v1135
    %v1182 = vpop.permute.xlu0 %1181
    %1185 = vset.pattern.permute.xlu0 0
    %1186 = vperm.xlu0 %1185, %v1136
    %v1187 = vpop.permute.xlu0 %1186
    %1190 = vset.pattern.permute.xlu0 0
    %1191 = vperm.xlu0 %1190, %v1137
    %v1192 = vpop.permute.xlu0 %1191
    %1195 = vset.pattern.permute.xlu0 0
    %1196 = vperm.xlu0 %1195, %v1138
    %v1197 = vpop.permute.xlu0 %1196
    %v1199 = vadd.f32 %v1171, %v1182
    %v1200 = vadd.f32 %v1172, %v1182
    %v1201 = vadd.f32 %v1173, %v1187
    %v1202 = vadd.f32 %v1174, %v1187
    %v1203 = vadd.f32 %v1175, %v1192
    %v1204 = vadd.f32 %v1176, %v1192
    %v1205 = vadd.f32 %v1177, %v1197
    %v1206 = vadd.f32 %v1178, %v1197
    %v1207 = vmax.f32 %v1199, 0.0
    %v1208 = vmax.f32 %v1200, 0.0
    %v1209 = vmax.f32 %v1201, 0.0
    %v1210 = vmax.f32 %v1202, 0.0
    %v1211 = vmax.f32 %v1203, 0.0
    %v1212 = vmax.f32 %v1204, 0.0
    %v1213 = vmax.f32 %v1205, 0.0
    %v1214 = vmax.f32 %v1206, 0.0
    %v1216 = vsel %vm1024, %v1139, 0
    %v1219 = vsel %vm1024, %v1140, 0
    %1221 = vmatpush.msra.mxu0 0.0
    %1222 = vmatpush.msra.mxu0 0.0
    %1223 = vmatpush.msra.mxu0 0.0
    %1224 = vmatpush.msra.mxu0 0.0
    %1225 = vmatpush.msra.mxu0 0.0
    %1226 = vmatpush.msra.mxu0 0.0
    %1227 = vmatpush.msra.mxu0 0.0
    %1228 = vmatpush.msra.mxu0 0.0
    %1229 = vmatpush.msra.mxu0 0.0
    %1230 = vmatpush.msra.mxu0 0.0
    %1231 = vmatpush.msra.mxu0 0.0
    %1232 = vmatpush.msra.mxu0 0.0
    %1233 = vmatpush.msra.mxu0 %v1213
    %1234 = vmatpush.msra.mxu0 %v1211
    %1235 = vmatpush.msra.mxu0 %v1209
    %1236 = vmatpush.msra.mxu0 %v1207
    %1237 = vmatmul.f32.gmra.mxu0 %v1216
    %v1238 = vpop.f32.mrf.mxu0
    %v1239 = vadd.f32 0.0, %v1238
    %1240 = vmatmul.f32.gmra.mxu0 %v1219
    %v1241 = vpop.f32.mrf.mxu0
    %v1242 = vadd.f32 0.0, %v1241
    %1243 = vdwg.mxu0
    %1244 = vmatpush.msra.mxu0 0.0
    %1245 = vmatpush.msra.mxu0 0.0
    %1246 = vmatpush.msra.mxu0 0.0
    %1247 = vmatpush.msra.mxu0 0.0
    %1248 = vmatpush.msra.mxu0 0.0
    %1249 = vmatpush.msra.mxu0 0.0
    %1250 = vmatpush.msra.mxu0 0.0
    %1251 = vmatpush.msra.mxu0 0.0
    %1252 = vmatpush.msra.mxu0 0.0
    %1253 = vmatpush.msra.mxu0 0.0
    %1254 = vmatpush.msra.mxu0 0.0
    %1255 = vmatpush.msra.mxu0 0.0
    %1256 = vmatpush.msra.mxu0 %v1214
    %1257 = vmatpush.msra.mxu0 %v1212
    %1258 = vmatpush.msra.mxu0 %v1210
    %1259 = vmatpush.msra.mxu0 %v1208
    %1260 = vmatmul.f32.gmra.mxu0 %v1216
    %v1261 = vpop.f32.mrf.mxu0
    %v1262 = vadd.f32 0.0, %v1261
    %1263 = vmatmul.f32.gmra.mxu0 %v1219
    %v1264 = vpop.f32.mrf.mxu0
    %v1265 = vadd.f32 0.0, %v1264
    %1266 = vdwg.mxu0
    %1268 = vset.pattern.permute.xlu0 0
    %1269 = vperm.xlu0 %1268, %v1141
    %v1270 = vpop.permute.xlu0 %1269
    %1273 = vset.pattern.permute.xlu0 0
    %1274 = vperm.xlu0 %1273, %v1142
    %v1275 = vpop.permute.xlu0 %1274
    %v1277 = vmul.f32 %v1239, %v1270
    %v1278 = vmul.f32 %v1262, %v1270
    %v1279 = vmul.f32 %v1242, %v1275
    %v1280 = vmul.f32 %v1265, %v1275
    %1282 = vset.pattern.permute.xlu0 0
    %1283 = vperm.xlu0 %1282, %v1143
    %v1284 = vpop.permute.xlu0 %1283
    %1287 = vset.pattern.permute.xlu0 0
    %1288 = vperm.xlu0 %1287, %v1144
    %v1289 = vpop.permute.xlu0 %1288
    %v1291 = vadd.f32 %v1277, %v1284
    %v1292 = vadd.f32 %v1278, %v1284
    %v1293 = vadd.f32 %v1279, %v1289
    %v1294 = vadd.f32 %v1280, %v1289
    %v1295 = vmax.f32 %v1291, 0.0
    %v1296 = vmax.f32 %v1292, 0.0
    %v1297 = vmax.f32 %v1293, 0.0
    %v1298 = vmax.f32 %v1294, 0.0
    %v1300 = vsel %vm1024, %v1147, 0
    %v1303 = vsel %vm1024, %v1148, 0
    %1305 = vmatpush.msra.mxu0 0.0
    %1306 = vmatpush.msra.mxu0 0.0
    %1307 = vmatpush.msra.mxu0 0.0
    %1308 = vmatpush.msra.mxu0 0.0
    %1309 = vmatpush.msra.mxu0 0.0
    %1310 = vmatpush.msra.mxu0 0.0
    %1311 = vmatpush.msra.mxu0 0.0
    %1312 = vmatpush.msra.mxu0 0.0
    %1313 = vmatpush.msra.mxu0 0.0
    %1314 = vmatpush.msra.mxu0 0.0
    %1315 = vmatpush.msra.mxu0 0.0
    %1316 = vmatpush.msra.mxu0 0.0
    %1317 = vmatpush.msra.mxu0 %v1129
    %1318 = vmatpush.msra.mxu0 %v1127
    %1319 = vmatpush.msra.mxu0 %v1125
    %1320 = vmatpush.msra.mxu0 %v1123
    %1321 = vmatmul.f32.gmra.mxu0 %v1300
    %v1322 = vpop.f32.mrf.mxu0
    %v1323 = vadd.f32 0.0, %v1322
    %1324 = vmatmul.f32.gmra.mxu0 %v1303
    %v1325 = vpop.f32.mrf.mxu0
    %v1326 = vadd.f32 0.0, %v1325
    %1327 = vdwg.mxu0
    %1328 = vmatpush.msra.mxu0 0.0
    %1329 = vmatpush.msra.mxu0 0.0
    %1330 = vmatpush.msra.mxu0 0.0
    %1331 = vmatpush.msra.mxu0 0.0
    %1332 = vmatpush.msra.mxu0 0.0
    %1333 = vmatpush.msra.mxu0 0.0
    %1334 = vmatpush.msra.mxu0 0.0
    %1335 = vmatpush.msra.mxu0 0.0
    %1336 = vmatpush.msra.mxu0 0.0
    %1337 = vmatpush.msra.mxu0 0.0
    %1338 = vmatpush.msra.mxu0 0.0
    %1339 = vmatpush.msra.mxu0 0.0
    %1340 = vmatpush.msra.mxu0 %v1130
    %1341 = vmatpush.msra.mxu0 %v1128
    %1342 = vmatpush.msra.mxu0 %v1126
    %1343 = vmatpush.msra.mxu0 %v1124
    %1344 = vmatmul.f32.gmra.mxu0 %v1300
    %v1345 = vpop.f32.mrf.mxu0
    %v1346 = vadd.f32 0.0, %v1345
    %1347 = vmatmul.f32.gmra.mxu0 %v1303
    %v1348 = vpop.f32.mrf.mxu0
    %v1349 = vadd.f32 0.0, %v1348
    %1350 = vdwg.mxu0
    %v1352 = vsel %vm132, %v1145, 0
    %v1355 = vsel %vm132, %v1146, 0
    %1357 = vmatpush.msra.mxu0 0.0
    %1358 = vmatpush.msra.mxu0 0.0
    %1359 = vmatpush.msra.mxu0 0.0
    %1360 = vmatpush.msra.mxu0 0.0
    %1361 = vmatpush.msra.mxu0 0.0
    %1362 = vmatpush.msra.mxu0 0.0
    %1363 = vmatpush.msra.mxu0 0.0
    %1364 = vmatpush.msra.mxu0 0.0
    %1365 = vmatpush.msra.mxu0 0.0
    %1366 = vmatpush.msra.mxu0 0.0
    %1367 = vmatpush.msra.mxu0 0.0
    %1368 = vmatpush.msra.mxu0 0.0
    %1369 = vmatpush.msra.mxu0 0.0
    %1370 = vmatpush.msra.mxu0 0.0
    %1371 = vmatpush.msra.mxu0 %v1297
    %1372 = vmatpush.msra.mxu0 %v1295
    %1373 = vmatmul.f32.gmra.mxu0 %v1352
    %v1374 = vpop.f32.mrf.mxu0
    %v1375 = vadd.f32 %v1323, %v1374
    %1376 = vmatmul.f32.gmra.mxu0 %v1355
    %v1377 = vpop.f32.mrf.mxu0
    %v1378 = vadd.f32 %v1326, %v1377
    %1379 = vdwg.mxu0
    %1380 = vmatpush.msra.mxu0 0.0
    %1381 = vmatpush.msra.mxu0 0.0
    %1382 = vmatpush.msra.mxu0 0.0
    %1383 = vmatpush.msra.mxu0 0.0
    %1384 = vmatpush.msra.mxu0 0.0
    %1385 = vmatpush.msra.mxu0 0.0
    %1386 = vmatpush.msra.mxu0 0.0
    %1387 = vmatpush.msra.mxu0 0.0
    %1388 = vmatpush.msra.mxu0 0.0
    %1389 = vmatpush.msra.mxu0 0.0
    %1390 = vmatpush.msra.mxu0 0.0
    %1391 = vmatpush.msra.mxu0 0.0
    %1392 = vmatpush.msra.mxu0 0.0
    %1393 = vmatpush.msra.mxu0 0.0
    %1394 = vmatpush.msra.mxu0 %v1298
    %1395 = vmatpush.msra.mxu0 %v1296
    %1396 = vmatmul.f32.gmra.mxu0 %v1352
    %v1397 = vpop.f32.mrf.mxu0
    %v1398 = vadd.f32 %v1346, %v1397
    %1399 = vmatmul.f32.gmra.mxu0 %v1355
    %v1400 = vpop.f32.mrf.mxu0
    %v1401 = vadd.f32 %v1349, %v1400
    %1402 = vdwg.mxu0
    %1404 = vset.pattern.permute.xlu0 0
    %1405 = vperm.xlu0 %1404, %v1149
    %v1406 = vpop.permute.xlu0 %1405
    %1409 = vset.pattern.permute.xlu0 0
    %1410 = vperm.xlu0 %1409, %v1150
    %v1411 = vpop.permute.xlu0 %1410
    %v1413 = vadd.f32 %v1375, %v1406
    %v1414 = vadd.f32 %v1398, %v1406
    %v1415 = vadd.f32 %v1378, %v1411
    %v1416 = vadd.f32 %v1401, %v1411
    %v1417 = vmax.f32 %v1413, 0.0
    %v1418 = vmax.f32 %v1414, 0.0
    %v1419 = vmax.f32 %v1415, 0.0
    %v1420 = vmax.f32 %v1416, 0.0
    %v1421 = vld [vmem:[#allocation5 + $0x380] sm:$0xff]
    %v1422 = vld [vmem:[#allocation5 + $0x388] sm:$0xff]
    %v1423 = vld [vmem:[#allocation5 + $0x390] sm:$0xff]
    %v1424 = vld [vmem:[#allocation5 + $0x398] sm:$0xff]
    %v1425 = vld [vmem:[#allocation5 + $0x3a0] sm:$0xff]
    %v1426 = vld [vmem:[#allocation5 + $0x3a8] sm:$0xff]
    %v1427 = vld [vmem:[#allocation5 + $0x3b0] sm:$0xff]
    %v1428 = vld [vmem:[#allocation5 + $0x3b8] sm:$0xff]
    %v1429 = vld [vmem:[#allocation5 + $0x3c0] sm:$0xff]
    %v1430 = vld [vmem:[#allocation5 + $0x3c8] sm:$0xff]
    %1432 = vset.pattern.permute.xlu0 0
    %1433 = vperm.xlu0 %1432, %v1421
    %v1434 = vpop.permute.xlu0 %1433
    %1437 = vset.pattern.permute.xlu0 0
    %1438 = vperm.xlu0 %1437, %v1422
    %v1439 = vpop.permute.xlu0 %1438
    %v1441 = vmul.f32 %v1417, %v1434
    %v1442 = vmul.f32 %v1418, %v1434
    %v1443 = vmul.f32 %v1419, %v1439
    %v1444 = vmul.f32 %v1420, %v1439
    %1446 = vset.pattern.permute.xlu0 0
    %1447 = vperm.xlu0 %1446, %v1423
    %v1448 = vpop.permute.xlu0 %1447
    %1451 = vset.pattern.permute.xlu0 0
    %1452 = vperm.xlu0 %1451, %v1424
    %v1453 = vpop.permute.xlu0 %1452
    %v1455 = vadd.f32 %v1441, %v1448
    %v1456 = vadd.f32 %v1442, %v1448
    %v1457 = vadd.f32 %v1443, %v1453
    %v1458 = vadd.f32 %v1444, %v1453
    %v1459 = vmax.f32 %v1455, 0.0
    %v1460 = vmax.f32 %v1456, 0.0
    %v1461 = vmax.f32 %v1457, 0.0
    %v1462 = vmax.f32 %v1458, 0.0
    %v1464 = vsel %vm132, %v1425, 0
    %1466 = vmatpush.msra.mxu0 0.0
    %1467 = vmatpush.msra.mxu0 0.0
    %1468 = vmatpush.msra.mxu0 0.0
    %1469 = vmatpush.msra.mxu0 0.0
    %1470 = vmatpush.msra.mxu0 0.0
    %1471 = vmatpush.msra.mxu0 0.0
    %1472 = vmatpush.msra.mxu0 0.0
    %1473 = vmatpush.msra.mxu0 0.0
    %1474 = vmatpush.msra.mxu0 0.0
    %1475 = vmatpush.msra.mxu0 0.0
    %1476 = vmatpush.msra.mxu0 0.0
    %1477 = vmatpush.msra.mxu0 0.0
    %1478 = vmatpush.msra.mxu0 0.0
    %1479 = vmatpush.msra.mxu0 0.0
    %1480 = vmatpush.msra.mxu0 %v1461
    %1481 = vmatpush.msra.mxu0 %v1459
    %1482 = vmatmul.f32.gmra.mxu0 %v1464
    %v1483 = vpop.f32.mrf.mxu0
    %v1484 = vadd.f32 0.0, %v1483
    %1485 = vdwg.mxu0
    %1486 = vmatpush.msra.mxu0 0.0
    %1487 = vmatpush.msra.mxu0 0.0
    %1488 = vmatpush.msra.mxu0 0.0
    %1489 = vmatpush.msra.mxu0 0.0
    %1490 = vmatpush.msra.mxu0 0.0
    %1491 = vmatpush.msra.mxu0 0.0
    %1492 = vmatpush.msra.mxu0 0.0
    %1493 = vmatpush.msra.mxu0 0.0
    %1494 = vmatpush.msra.mxu0 0.0
    %1495 = vmatpush.msra.mxu0 0.0
    %1496 = vmatpush.msra.mxu0 0.0
    %1497 = vmatpush.msra.mxu0 0.0
    %1498 = vmatpush.msra.mxu0 0.0
    %1499 = vmatpush.msra.mxu0 0.0
    %1500 = vmatpush.msra.mxu0 %v1462
    %1501 = vmatpush.msra.mxu0 %v1460
    %1502 = vmatmul.f32.gmra.mxu0 %v1464
    %v1503 = vpop.f32.mrf.mxu0
    %v1504 = vadd.f32 0.0, %v1503
    %1505 = vdwg.mxu0
    %1507 = vset.pattern.permute.xlu0 0
    %1508 = vperm.xlu0 %1507, %v1426
    %v1509 = vpop.permute.xlu0 %1508
    %v1511 = vmul.f32 %v1484, %v1509
    %v1512 = vmul.f32 %v1504, %v1509
    %1514 = vset.pattern.permute.xlu0 0
    %1515 = vperm.xlu0 %1514, %v1427
    %v1516 = vpop.permute.xlu0 %1515
    %v1518 = vadd.f32 %v1511, %v1516
    %v1519 = vadd.f32 %v1512, %v1516
    %v1520 = vmax.f32 %v1518, 0.0
    %v1521 = vmax.f32 %v1519, 0.0
    %v1523 = vsel %vm132, %v1429, 0
    %1525 = vmatpush.msra.mxu0 0.0
    %1526 = vmatpush.msra.mxu0 0.0
    %1527 = vmatpush.msra.mxu0 0.0
    %1528 = vmatpush.msra.mxu0 0.0
    %1529 = vmatpush.msra.mxu0 0.0
    %1530 = vmatpush.msra.mxu0 0.0
    %1531 = vmatpush.msra.mxu0 0.0
    %1532 = vmatpush.msra.mxu0 0.0
    %1533 = vmatpush.msra.mxu0 0.0
    %1534 = vmatpush.msra.mxu0 0.0
    %1535 = vmatpush.msra.mxu0 0.0
    %1536 = vmatpush.msra.mxu0 0.0
    %1537 = vmatpush.msra.mxu0 0.0
    %1538 = vmatpush.msra.mxu0 0.0
    %1539 = vmatpush.msra.mxu0 %v1419
    %1540 = vmatpush.msra.mxu0 %v1417
    %1541 = vmatmul.f32.gmra.mxu0 %v1523
    %v1542 = vpop.f32.mrf.mxu0
    %v1543 = vadd.f32 0.0, %v1542
    %1544 = vdwg.mxu0
    %1545 = vmatpush.msra.mxu0 0.0
    %1546 = vmatpush.msra.mxu0 0.0
    %1547 = vmatpush.msra.mxu0 0.0
    %1548 = vmatpush.msra.mxu0 0.0
    %1549 = vmatpush.msra.mxu0 0.0
    %1550 = vmatpush.msra.mxu0 0.0
    %1551 = vmatpush.msra.mxu0 0.0
    %1552 = vmatpush.msra.mxu0 0.0
    %1553 = vmatpush.msra.mxu0 0.0
    %1554 = vmatpush.msra.mxu0 0.0
    %1555 = vmatpush.msra.mxu0 0.0
    %1556 = vmatpush.msra.mxu0 0.0
    %1557 = vmatpush.msra.mxu0 0.0
    %1558 = vmatpush.msra.mxu0 0.0
    %1559 = vmatpush.msra.mxu0 %v1420
    %1560 = vmatpush.msra.mxu0 %v1418
    %1561 = vmatmul.f32.gmra.mxu0 %v1523
    %v1562 = vpop.f32.mrf.mxu0
    %v1563 = vadd.f32 0.0, %v1562
    %1564 = vdwg.mxu0
    %vm1565 = vcmask 64512
    %v1567 = vsel %vm1565, %v1428, 0
    %1569 = vmatpush.msra.mxu0 0.0
    %1570 = vmatpush.msra.mxu0 0.0
    %1571 = vmatpush.msra.mxu0 0.0
    %1572 = vmatpush.msra.mxu0 0.0
    %1573 = vmatpush.msra.mxu0 0.0
    %1574 = vmatpush.msra.mxu0 0.0
    %1575 = vmatpush.msra.mxu0 0.0
    %1576 = vmatpush.msra.mxu0 0.0
    %1577 = vmatpush.msra.mxu0 0.0
    %1578 = vmatpush.msra.mxu0 0.0
    %1579 = vmatpush.msra.mxu0 0.0
    %1580 = vmatpush.msra.mxu0 0.0
    %1581 = vmatpush.msra.mxu0 0.0
    %1582 = vmatpush.msra.mxu0 0.0
    %1583 = vmatpush.msra.mxu0 0.0
    %1584 = vmatpush.msra.mxu0 %v1520
    %1585 = vmatmul.f32.gmra.mxu0 %v1567
    %v1586 = vpop.f32.mrf.mxu0
    %v1587 = vadd.f32 %v1543, %v1586
    %1588 = vdwg.mxu0
    %1589 = vmatpush.msra.mxu0 0.0
    %1590 = vmatpush.msra.mxu0 0.0
    %1591 = vmatpush.msra.mxu0 0.0
    %1592 = vmatpush.msra.mxu0 0.0
    %1593 = vmatpush.msra.mxu0 0.0
    %1594 = vmatpush.msra.mxu0 0.0
    %1595 = vmatpush.msra.mxu0 0.0
    %1596 = vmatpush.msra.mxu0 0.0
    %1597 = vmatpush.msra.mxu0 0.0
    %1598 = vmatpush.msra.mxu0 0.0
    %1599 = vmatpush.msra.mxu0 0.0
    %1600 = vmatpush.msra.mxu0 0.0
    %1601 = vmatpush.msra.mxu0 0.0
    %1602 = vmatpush.msra.mxu0 0.0
    %1603 = vmatpush.msra.mxu0 0.0
    %1604 = vmatpush.msra.mxu0 %v1521
    %1605 = vmatmul.f32.gmra.mxu0 %v1567
    %v1606 = vpop.f32.mrf.mxu0
    %v1607 = vadd.f32 %v1563, %v1606
    %1608 = vdwg.mxu0
    %1610 = vset.pattern.permute.xlu0 0
    %1611 = vperm.xlu0 %1610, %v1430
    %v1612 = vpop.permute.xlu0 %1611
    %v1614 = vadd.f32 %v1587, %v1612
    %v1615 = vadd.f32 %v1607, %v1612
    %v1616 = vmax.f32 %v1614, 0.0
    %v1617 = vmax.f32 %v1615, 0.0
    %v1618 = vld [vmem:[#allocation5 + $0x3d0] sm:$0xf]
    %v1619 = vld [vmem:[#allocation5 + $0x3d8] sm:$0xf]
    %1621 = vset.pattern.permute.xlu0 0
    %1622 = vperm.xlu0 %1621, %v1619
    %v1623 = vpop.permute.xlu0 %1622
    %v1626 = vsel %vm1565, %v1618, 0
    %1628 = vmatpush.msra.mxu0 0.0
    %1629 = vmatpush.msra.mxu0 0.0
    %1630 = vmatpush.msra.mxu0 0.0
    %1631 = vmatpush.msra.mxu0 0.0
    %1632 = vmatpush.msra.mxu0 0.0
    %1633 = vmatpush.msra.mxu0 0.0
    %1634 = vmatpush.msra.mxu0 0.0
    %1635 = vmatpush.msra.mxu0 0.0
    %1636 = vmatpush.msra.mxu0 0.0
    %1637 = vmatpush.msra.mxu0 0.0
    %1638 = vmatpush.msra.mxu0 0.0
    %1639 = vmatpush.msra.mxu0 0.0
    %1640 = vmatpush.msra.mxu0 0.0
    %1641 = vmatpush.msra.mxu0 0.0
    %1642 = vmatpush.msra.mxu0 0.0
    %1643 = vmatpush.msra.mxu0 %v1616
    %1644 = vmatmul.f32.gmra.mxu0 %v1626
    %v1645 = vpop.f32.mrf.mxu0
    %v1646 = vadd.f32 %v1623, %v1645
    %1647 = vdwg.mxu0
    %1648 = vmatpush.msra.mxu0 0.0
    %1649 = vmatpush.msra.mxu0 0.0
    %1650 = vmatpush.msra.mxu0 0.0
    %1651 = vmatpush.msra.mxu0 0.0
    %1652 = vmatpush.msra.mxu0 0.0
    %1653 = vmatpush.msra.mxu0 0.0
    %1654 = vmatpush.msra.mxu0 0.0
    %1655 = vmatpush.msra.mxu0 0.0
    %1656 = vmatpush.msra.mxu0 0.0
    %1657 = vmatpush.msra.mxu0 0.0
    %1658 = vmatpush.msra.mxu0 0.0
    %1659 = vmatpush.msra.mxu0 0.0
    %1660 = vmatpush.msra.mxu0 0.0
    %1661 = vmatpush.msra.mxu0 0.0
    %1662 = vmatpush.msra.mxu0 0.0
    %1663 = vmatpush.msra.mxu0 %v1617
    %1664 = vmatmul.f32.gmra.mxu0 %v1626
    %v1665 = vpop.f32.mrf.mxu0
    %v1666 = vadd.f32 %v1623, %v1665
    %1667 = vdwg.mxu0
    %v1670 = vrot.slane %v1666, 4
    %vm1671 = vcmask 1043456
    %v1672 = vsel %vm1671, %v1646, %v1670
    %1674 = vst [vmem:[#allocation7] sm:$0xff] %v1672
    // Predicated region
    $region18: #{tpu_custom_call.1} parent=1 // pred_check
      _
    $region19: #{tpu_custom_call.1} parent=1 // pred_check_branch
      %1676 = sbr.rel (0) target = $region21
    $region20: #{tpu_custom_call.1} parent=1 // pred_region
      %1678 = vsyncadd [#allocation4], 0
      %s1680 = sshll.u32 [#allocation7], 4
      %s1681 = int_to_ptr.vmem [resolvable:$true] %s1680
      %s1682 = sshll.u32 %s2, 4
      %s1683 = int_to_ptr.hbm [resolvable:$true] %s1682
      %1685 = dma.vmem_to_hbm [thread:$0]  %s1681, 128, %s1683, [#allocation4]
    $region21: #{tpu_custom_call.1} parent=1 // pred_fallthru
      _
    // Predicated region
    $region22: #{tpu_custom_call.1} parent=1 // pred_check
      _
    $region23: #{tpu_custom_call.1} parent=1 // pred_check_branch
      %1687 = sbr.rel (0) target = $region25
    $region24: #{tpu_custom_call.1} parent=1 // pred_region
      %1689 = dma.done [#allocation4], 128
    $region25: #{tpu_custom_call.1} parent=1 // pred_fallthru
      _
    %1690 = vsyncpa [#allocation3], 1
    %1691 = vsyncpa [#allocation6], 1
    %1692 = vsyncpa [#allocation4], 1

</llo_original>
